<compile_context>
chip_gen: v6e
topology: v6e:2x2x1
jax: 0.10.0
libtpu: 0.0.40
codegen_flags: <defaults>
</compile_context>

<pallas_src>
import numpy as np
import jax
import jax.numpy as jnp
from jax.experimental import pallas as pl
from jax.experimental.pallas import tpu as pltpu

# ---- static model configuration (small demo shapes) ------------------------
B = 2                          # batch
L = 256                        # input sequence length (Conv1d width)
F = 128                        # feature_size (AdaptiveAvgPool2d target width)
NC = 10                        # class_num
NC_PAD = 128                   # lane-padded class dim (lane-dense matmul + store)
K = 3                          # kernel_size (padding=1 -> 'same')
CONV_SIZES = (64, 32, 16, 8, 4)
NB = len(CONV_SIZES)           # 5 branches
NB_PAD = 8                     # branch rows padded to one sublane tile
C_STARTS = (0, 64, 96, 112, 120)
CTOT = 128                     # concatenated channel slab (124 real + 4 zero channels)
NTAP = 8                       # conv taps [w0, w1, w2, bias] padded to 8 rows
NEG_BIG = -1e30                # bias of padded logit lanes (exp -> 0)


# ---- Pallas kernel: whole forward pass --------------------------------------
def cwru_kernel(x4_ref, w4_ref, sel_ref, pool_ref, maskf_ref, wblk_ref,
                wlin_ref, blin_ref, out_ref):
    # x4_ref:   (NTAP, B*L)      host-built conv1 tap matrix [x[l-1]; x[l]; x[l+1]; 1; 0..]
    # w4_ref:   (CTOT, NTAP)     folded conv1 weights [w0 w1 w2 b]/C per channel
    # sel_ref:  (NB_PAD, CTOT)   0/1 branch selector (per-branch channel sum)
    # pool_ref: (L, F)           exact PyTorch adaptive-avg-pool bin matrix
    # maskf_ref:(2, F)           conv2 edge masks: row0 zeroes l==0, row1 zeroes l==F-1
    # wblk_ref: (CTOT, 4*NB_PAD) block-structured folded conv2 weights
    # wlin_ref: (F, NC_PAD)      Linear weight^T, zero-padded lanes
    # blin_ref: (1, NC_PAD)      Linear bias, padded lanes carry -1e30
    # out_ref:  (B, NC_PAD)      softmax probabilities (pad lanes == 0)

    # phase 1: conv1 + relu for all branches & both batches in ONE MXU matmul.
    z1 = jnp.dot(w4_ref[...], x4_ref[...],
                 preferred_element_type=jnp.float32)           # (CTOT, B*L)
    y1 = jnp.maximum(z1, 0.0)
    # per-branch channel mean (1/C folded into w4) via selector matmul (MXU).
    m1 = jnp.dot(sel_ref[...], y1,
                 preferred_element_type=jnp.float32)           # (NB_PAD, B*L)

    mask_l = maskf_ref[0:1, :]                                 # (1, F)
    mask_r = maskf_ref[1:2, :]
    ones_rows = jnp.ones((NB_PAD, F), jnp.float32)             # bias rows of X2
    ones_chan = jnp.ones((1, CTOT), jnp.float32)               # channel/branch sum vector

    for b in range(B):                                         # B == 2, trace-unrolled
        # phase 2: adaptive avg-pool L -> F (exact PyTorch bins) for this batch.
        p1 = jnp.dot(m1[:, b * L:(b + 1) * L], pool_ref[...],
                     preferred_element_type=jnp.float32)       # (NB_PAD, F)
        # phase 3: conv2 + relu + channel & branch sum as one block-structured matmul.
        p1m = mask_l * pltpu.roll(p1, shift=1, axis=1)         # p1[l-1], 0 at l == 0
        p1p = mask_r * pltpu.roll(p1, shift=F - 1, axis=1)     # p1[l+1], 0 at l == F-1
        x2 = jnp.concatenate([p1m, p1, p1p, ones_rows], axis=0)   # (4*NB_PAD, F)
        z2 = jnp.dot(wblk_ref[...], x2,
                     preferred_element_type=jnp.float32)       # (CTOT, F)
        acc = jnp.dot(ones_chan, jnp.maximum(z2, 0.0),
                      preferred_element_type=jnp.float32)      # (1, F)
        # phase 4: Linear (lane-padded to 128) + exact softmax over classes.
        logits = jnp.dot(acc, wlin_ref[...],
                         preferred_element_type=jnp.float32) + blin_ref[...]
        e = jnp.exp(logits - jnp.max(logits, axis=1, keepdims=True))
        out_ref[b:b + 1, :] = e / jnp.sum(e, axis=1, keepdims=True)


def cwru_forward(x_ncl, w4, sel, poolmat, maskf, wblk, wlin_pad, blin_pad):
    x2 = x_ncl[:, 0, :]                                 # squeeze in_channels=1 -> (B, L)
    # zero-FLOP im2col-style layout prep: shifted taps + bias row, batch along lanes.
    xm1 = jnp.pad(x2, ((0, 0), (1, 0)))[:, :L]          # x[l-1], 0 at l == 0
    xp1 = jnp.pad(x2, ((0, 0), (0, 1)))[:, 1:]          # x[l+1], 0 at l == L-1
    x4 = jnp.concatenate([xm1.reshape(1, B * L),
                          x2.reshape(1, B * L),
                          xp1.reshape(1, B * L),
                          jnp.ones((1, B * L), jnp.float32),
                          jnp.zeros((NTAP - 4, B * L), jnp.float32)], axis=0)

    flops = 2 * (CTOT * NTAP * B * L                    # conv1 tap matmul
                 + NB_PAD * CTOT * B * L                # per-branch channel-mean selector
                 + B * (NB_PAD * L * F                  # adaptive pool
                        + CTOT * 4 * NB_PAD * F         # conv2 block matmul
                        + CTOT * F                      # channel/branch sum
                        + F * NC_PAD))                  # linear
    bytes_accessed = 4 * (NTAP * B * L + CTOT * NTAP + NB_PAD * CTOT + L * F
                          + 2 * F + CTOT * 4 * NB_PAD + F * NC_PAD + NC_PAD + B * NC_PAD)

    out_pad = pl.pallas_call(
        cwru_kernel,
        out_shape=jax.ShapeDtypeStruct((B, NC_PAD), jnp.float32),
        in_specs=[pl.BlockSpec(memory_space=pltpu.MemorySpace.VMEM) for _ in range(8)],
        out_specs=pl.BlockSpec(memory_space=pltpu.MemorySpace.VMEM),
        cost_estimate=pl.CostEstimate(flops=flops, transcendentals=B * NC_PAD,
                                      bytes_accessed=bytes_accessed),
    )(x4, w4, sel, poolmat, maskf, wblk, wlin_pad, blin_pad)
    return out_pad[:, :NC]                              # drop lane padding


cwru_forward_jit = jax.jit(cwru_forward)


# ---- numpy float64 reference (mirrors PyTorch op-by-op) ---------------------
def _conv1d_np(x, w, b):  # x (B, Lx), w (C, K), b (C,)
    Bn, Lx = x.shape
    xp = np.pad(x, ((0, 0), (1, 1)))
    y = np.zeros((Bn, w.shape[0], Lx))
    for k in range(K):
        y += w[:, k][None, :, None] * xp[:, None, k:k + Lx]
    return y + b[None, :, None]


def reference_np(x_ncl, ws, bs, poolmat, wlin, blin):
    x2 = x_ncl[:, 0, :].astype(np.float64)
    pool64 = poolmat.astype(np.float64)
    acc = np.zeros((B, F))
    for w, bb in zip(ws, bs):
        w64, b64 = w.astype(np.float64), bb.astype(np.float64)
        y1 = np.maximum(_conv1d_np(x2, w64, b64), 0.0)
        p1 = y1.mean(axis=1) @ pool64
        y2 = np.maximum(_conv1d_np(p1, w64, b64), 0.0)
        acc += y2.mean(axis=1)
    logits = acc @ wlin.astype(np.float64) + blin.astype(np.float64)
    z = logits - logits.max(axis=1, keepdims=True)
    e = np.exp(z)
    return e / e.sum(axis=1, keepdims=True)


if __name__ == "__main__":
    key = jax.random.PRNGKey(0)
    keys = iter(jax.random.split(key, 2 * NB + 4))

    # deterministic parameter init (shapes follow the nn.Module __init__)
    ws, bs = [], []
    for C in CONV_SIZES:
        ws.append(np.asarray(jax.random.normal(next(keys), (C, K)) * 0.3, np.float32))
        bs.append(np.asarray(jax.random.normal(next(keys), (C,)) * 0.1, np.float32))
    wlin = np.asarray(jax.random.normal(next(keys), (F, NC)) * 0.1, np.float32)  # Linear(F,NC).weight.T
    blin = np.asarray(jax.random.normal(next(keys), (1, NC)) * 0.1, np.float32)
    x = np.asarray(jax.random.normal(next(keys), (B, 1, L)), np.float32)         # NCW input

    # folded + packed conv parameters (1/C channel-mean folded in; exact, C = 2^k;
    # relu((w/C)x + b/C) = relu(wx + b)/C by positive homogeneity).
    w4 = np.zeros((CTOT, NTAP), np.float32)            # conv1: [w0 w1 w2 b] per channel
    wblk = np.zeros((CTOT, 4 * NB_PAD), np.float32)    # conv2: block-structured per branch
    sel = np.zeros((NB_PAD, CTOT), np.float32)         # per-branch channel selector
    for i, (C, s) in enumerate(zip(CONV_SIZES, C_STARTS)):
        w4[s:s + C, 0:K] = ws[i] / C
        w4[s:s + C, K] = bs[i] / C
        wblk[s:s + C, i] = ws[i][:, 0] / C
        wblk[s:s + C, NB_PAD + i] = ws[i][:, 1] / C
        wblk[s:s + C, 2 * NB_PAD + i] = ws[i][:, 2] / C
        wblk[s:s + C, 3 * NB_PAD + i] = bs[i] / C
        sel[i, s:s + C] = 1.0

    # exact PyTorch adaptive-avg-pool bin matrix for the W dimension (L -> F)
    poolmat = np.zeros((L, F), np.float32)
    for j in range(F):
        s0 = (j * L) // F
        e0 = ((j + 1) * L + F - 1) // F
        poolmat[s0:e0, j] = 1.0 / (e0 - s0)

    # conv2 'same'-padding edge masks (row 0: left edge, row 1: right edge)
    maskf = np.ones((2, F), np.float32)
    maskf[0, 0] = 0.0
    maskf[1, F - 1] = 0.0

    # lane-padded Linear params: padded logits get -1e30 bias -> softmax ignores them
    wlin_pad = np.zeros((F, NC_PAD), np.float32)
    wlin_pad[:, :NC] = wlin
    blin_pad = np.full((1, NC_PAD), NEG_BIG, np.float32)
    blin_pad[:, :NC] = blin

    out = cwru_forward_jit(jnp.asarray(x), jnp.asarray(w4), jnp.asarray(sel),
                           jnp.asarray(poolmat), jnp.asarray(maskf), jnp.asarray(wblk),
                           jnp.asarray(wlin_pad), jnp.asarray(blin_pad))
    out = jax.block_until_ready(out)

    ref = reference_np(x, ws, bs, poolmat, wlin, blin)
    out_np = np.asarray(out)
    assert out.shape == (B, NC)
    assert np.all(np.isfinite(out_np))
    assert np.allclose(out_np, ref, atol=5e-3, rtol=5e-3), "mismatch vs reference"
    print("KERNEL_OK")
</pallas_src>

<mosaic_0001>
module attributes {stable_mosaic.version = 11 : i64} {
  func.func @cwru_kernel(%arg0: memref<8x512xf32, #tpu.memory_space<vmem>>, %arg1: memref<128x8xf32, #tpu.memory_space<vmem>>, %arg2: memref<8x128xf32, #tpu.memory_space<vmem>>, %arg3: memref<256x128xf32, #tpu.memory_space<vmem>>, %arg4: memref<2x128xf32, #tpu.memory_space<vmem>>, %arg5: memref<128x32xf32, #tpu.memory_space<vmem>>, %arg6: memref<128x128xf32, #tpu.memory_space<vmem>>, %arg7: memref<1x128xf32, #tpu.memory_space<vmem>>, %arg8: memref<2x128xf32, #tpu.memory_space<vmem>>) attributes {dimension_semantics = [], scalar_prefetch = 0 : i64, scratch_operands = 0 : i64, tpu.core_type = #tpu.core_type<tc>} {
    %c0 = arith.constant 0 : index
    %c0_0 = arith.constant 0 : index
    %0 = vector.load %arg1[%c0, %c0_0] : memref<128x8xf32, #tpu.memory_space<vmem>>, vector<128x8xf32>
    %c0_1 = arith.constant 0 : index
    %c0_2 = arith.constant 0 : index
    %1 = vector.load %arg0[%c0_1, %c0_2] : memref<8x512xf32, #tpu.memory_space<vmem>>, vector<8x512xf32>
    %cst = arith.constant dense<0.000000e+00> : vector<128x512xf32>
    %2 = tpu.matmul %0, %1, %cst {dimension_numbers = #tpu.dot_dimension_numbers<[1], [0], [0], [1], [0, 0, 1, 1], [], []>} : vector<128x8xf32>, vector<8x512xf32>, vector<128x512xf32> -> vector<128x512xf32>
    %cst_3 = arith.constant 0.000000e+00 : f32
    %3 = vector.broadcast %cst_3 : f32 to vector<128x512xf32>
    %4 = arith.maximumf %2, %3 : vector<128x512xf32>
    %c0_4 = arith.constant 0 : index
    %c0_5 = arith.constant 0 : index
    %5 = vector.load %arg2[%c0_4, %c0_5] : memref<8x128xf32, #tpu.memory_space<vmem>>, vector<8x128xf32>
    %cst_6 = arith.constant dense<0.000000e+00> : vector<8x512xf32>
    %6 = tpu.matmul %5, %4, %cst_6 {dimension_numbers = #tpu.dot_dimension_numbers<[1], [0], [0], [1], [0, 0, 1, 1], [], []>} : vector<8x128xf32>, vector<128x512xf32>, vector<8x512xf32> -> vector<8x512xf32>
    %c0_7 = arith.constant 0 : index
    %c0_8 = arith.constant 0 : index
    %7 = vector.load %arg4[%c0_7, %c0_8] : memref<2x128xf32, #tpu.memory_space<vmem>>, vector<1x128xf32>
    %c1 = arith.constant 1 : index
    %c0_9 = arith.constant 0 : index
    %8 = vector.load %arg4[%c1, %c0_9] : memref<2x128xf32, #tpu.memory_space<vmem>>, vector<1x128xf32>
    %cst_10 = arith.constant 1.000000e+00 : f32
    %9 = vector.broadcast %cst_10 : f32 to vector<8x128xf32>
    %cst_11 = arith.constant 1.000000e+00 : f32
    %10 = vector.broadcast %cst_11 : f32 to vector<1x128xf32>
    %11 = vector.extract_strided_slice %6 {offsets = [0, 0], sizes = [8, 256], strides = [1, 1]} : vector<8x512xf32> to vector<8x256xf32>
    %c0_12 = arith.constant 0 : index
    %c0_13 = arith.constant 0 : index
    %12 = vector.load %arg3[%c0_12, %c0_13] : memref<256x128xf32, #tpu.memory_space<vmem>>, vector<256x128xf32>
    %cst_14 = arith.constant dense<0.000000e+00> : vector<8x128xf32>
    %13 = tpu.matmul %11, %12, %cst_14 {dimension_numbers = #tpu.dot_dimension_numbers<[1], [0], [0], [1], [0, 0, 1, 1], [], []>} : vector<8x256xf32>, vector<256x128xf32>, vector<8x128xf32> -> vector<8x128xf32>
    %c1_i32 = arith.constant 1 : i32
    %14 = tpu.dynamic_rotate %13 by %c1_i32 dim 1 : vector<8x128xf32>, i32 -> vector<8x128xf32>
    %15 = vector.broadcast %7 : vector<1x128xf32> to vector<8x128xf32>
    %16 = arith.mulf %15, %14 : vector<8x128xf32>
    %c127_i32 = arith.constant 127 : i32
    %17 = tpu.dynamic_rotate %13 by %c127_i32 dim 1 : vector<8x128xf32>, i32 -> vector<8x128xf32>
    %18 = vector.broadcast %8 : vector<1x128xf32> to vector<8x128xf32>
    %19 = arith.mulf %18, %17 : vector<8x128xf32>
    %20 = tpu.concatenate %16, %13, %19, %9 in 0 : vector<8x128xf32>, vector<8x128xf32>, vector<8x128xf32>, vector<8x128xf32> -> vector<32x128xf32>
    %c0_15 = arith.constant 0 : index
    %c0_16 = arith.constant 0 : index
    %21 = vector.load %arg5[%c0_15, %c0_16] : memref<128x32xf32, #tpu.memory_space<vmem>>, vector<128x32xf32>
    %cst_17 = arith.constant dense<0.000000e+00> : vector<128x128xf32>
    %22 = tpu.matmul %21, %20, %cst_17 {dimension_numbers = #tpu.dot_dimension_numbers<[1], [0], [0], [1], [0, 0, 1, 1], [], []>} : vector<128x32xf32>, vector<32x128xf32>, vector<128x128xf32> -> vector<128x128xf32>
    %cst_18 = arith.constant 0.000000e+00 : f32
    %23 = vector.broadcast %cst_18 : f32 to vector<128x128xf32>
    %24 = arith.maximumf %22, %23 : vector<128x128xf32>
    %cst_19 = arith.constant dense<0.000000e+00> : vector<1x128xf32>
    %25 = tpu.matmul %10, %24, %cst_19 {dimension_numbers = #tpu.dot_dimension_numbers<[1], [0], [0], [1], [0, 0, 1, 1], [], []>} : vector<1x128xf32>, vector<128x128xf32>, vector<1x128xf32> -> vector<1x128xf32>
    %c0_20 = arith.constant 0 : index
    %c0_21 = arith.constant 0 : index
    %26 = vector.load %arg6[%c0_20, %c0_21] : memref<128x128xf32, #tpu.memory_space<vmem>>, vector<128x128xf32>
    %cst_22 = arith.constant dense<0.000000e+00> : vector<1x128xf32>
    %27 = tpu.matmul %25, %26, %cst_22 {dimension_numbers = #tpu.dot_dimension_numbers<[1], [0], [0], [1], [0, 0, 1, 1], [], []>} : vector<1x128xf32>, vector<128x128xf32>, vector<1x128xf32> -> vector<1x128xf32>
    %c0_23 = arith.constant 0 : index
    %c0_24 = arith.constant 0 : index
    %28 = vector.load %arg7[%c0_23, %c0_24] : memref<1x128xf32, #tpu.memory_space<vmem>>, vector<1x128xf32>
    %29 = arith.addf %27, %28 : vector<1x128xf32>
    %cst_25 = arith.constant dense<0xFF800000> : vector<1xf32>
    %30 = vector.multi_reduction <maximumf>, %29, %cst_25 [1] : vector<1x128xf32> to vector<1xf32>
    %31 = vector.shape_cast %30 : vector<1xf32> to vector<1x1xf32>
    %32 = vector.broadcast %31 : vector<1x1xf32> to vector<1x128xf32>
    %33 = arith.subf %29, %32 : vector<1x128xf32>
    %34 = math.exp %33 : vector<1x128xf32>
    %cst_26 = arith.constant dense<0.000000e+00> : vector<1xf32>
    %35 = vector.multi_reduction <add>, %34, %cst_26 [1] : vector<1x128xf32> to vector<1xf32>
    %36 = vector.shape_cast %35 : vector<1xf32> to vector<1x1xf32>
    %37 = vector.broadcast %36 : vector<1x1xf32> to vector<1x128xf32>
    %38 = arith.divf %34, %37 : vector<1x128xf32>
    %c0_27 = arith.constant 0 : index
    %c0_28 = arith.constant 0 : index
    %39 = vector.load %arg8[%c0_27, %c0_28] : memref<2x128xf32, #tpu.memory_space<vmem>>, vector<1x128xf32>
    tpu.vector_store %arg8[%c0_27, %c0_28], %38 {strides = array<i32>} : memref<2x128xf32, #tpu.memory_space<vmem>>, vector<1x128xf32>,
    %40 = vector.extract_strided_slice %6 {offsets = [0, 256], sizes = [8, 256], strides = [1, 1]} : vector<8x512xf32> to vector<8x256xf32>
    %c0_29 = arith.constant 0 : index
    %c0_30 = arith.constant 0 : index
    %41 = vector.load %arg3[%c0_29, %c0_30] : memref<256x128xf32, #tpu.memory_space<vmem>>, vector<256x128xf32>
    %cst_31 = arith.constant dense<0.000000e+00> : vector<8x128xf32>
    %42 = tpu.matmul %40, %41, %cst_31 {dimension_numbers = #tpu.dot_dimension_numbers<[1], [0], [0], [1], [0, 0, 1, 1], [], []>} : vector<8x256xf32>, vector<256x128xf32>, vector<8x128xf32> -> vector<8x128xf32>
    %c1_i32_32 = arith.constant 1 : i32
    %43 = tpu.dynamic_rotate %42 by %c1_i32_32 dim 1 : vector<8x128xf32>, i32 -> vector<8x128xf32>
    %44 = vector.broadcast %7 : vector<1x128xf32> to vector<8x128xf32>
    %45 = arith.mulf %44, %43 : vector<8x128xf32>
    %c127_i32_33 = arith.constant 127 : i32
    %46 = tpu.dynamic_rotate %42 by %c127_i32_33 dim 1 : vector<8x128xf32>, i32 -> vector<8x128xf32>
    %47 = vector.broadcast %8 : vector<1x128xf32> to vector<8x128xf32>
    %48 = arith.mulf %47, %46 : vector<8x128xf32>
    %49 = tpu.concatenate %45, %42, %48, %9 in 0 : vector<8x128xf32>, vector<8x128xf32>, vector<8x128xf32>, vector<8x128xf32> -> vector<32x128xf32>
    %c0_34 = arith.constant 0 : index
    %c0_35 = arith.constant 0 : index
    %50 = vector.load %arg5[%c0_34, %c0_35] : memref<128x32xf32, #tpu.memory_space<vmem>>, vector<128x32xf32>
    %cst_36 = arith.constant dense<0.000000e+00> : vector<128x128xf32>
    %51 = tpu.matmul %50, %49, %cst_36 {dimension_numbers = #tpu.dot_dimension_numbers<[1], [0], [0], [1], [0, 0, 1, 1], [], []>} : vector<128x32xf32>, vector<32x128xf32>, vector<128x128xf32> -> vector<128x128xf32>
    %cst_37 = arith.constant 0.000000e+00 : f32
    %52 = vector.broadcast %cst_37 : f32 to vector<128x128xf32>
    %53 = arith.maximumf %51, %52 : vector<128x128xf32>
    %cst_38 = arith.constant dense<0.000000e+00> : vector<1x128xf32>
    %54 = tpu.matmul %10, %53, %cst_38 {dimension_numbers = #tpu.dot_dimension_numbers<[1], [0], [0], [1], [0, 0, 1, 1], [], []>} : vector<1x128xf32>, vector<128x128xf32>, vector<1x128xf32> -> vector<1x128xf32>
    %c0_39 = arith.constant 0 : index
    %c0_40 = arith.constant 0 : index
    %55 = vector.load %arg6[%c0_39, %c0_40] : memref<128x128xf32, #tpu.memory_space<vmem>>, vector<128x128xf32>
    %cst_41 = arith.constant dense<0.000000e+00> : vector<1x128xf32>
    %56 = tpu.matmul %54, %55, %cst_41 {dimension_numbers = #tpu.dot_dimension_numbers<[1], [0], [0], [1], [0, 0, 1, 1], [], []>} : vector<1x128xf32>, vector<128x128xf32>, vector<1x128xf32> -> vector<1x128xf32>
    %c0_42 = arith.constant 0 : index
    %c0_43 = arith.constant 0 : index
    %57 = vector.load %arg7[%c0_42, %c0_43] : memref<1x128xf32, #tpu.memory_space<vmem>>, vector<1x128xf32>
    %58 = arith.addf %56, %57 : vector<1x128xf32>
    %cst_44 = arith.constant dense<0xFF800000> : vector<1xf32>
    %59 = vector.multi_reduction <maximumf>, %58, %cst_44 [1] : vector<1x128xf32> to vector<1xf32>
    %60 = vector.shape_cast %59 : vector<1xf32> to vector<1x1xf32>
    %61 = vector.broadcast %60 : vector<1x1xf32> to vector<1x128xf32>
    %62 = arith.subf %58, %61 : vector<1x128xf32>
    %63 = math.exp %62 : vector<1x128xf32>
    %cst_45 = arith.constant dense<0.000000e+00> : vector<1xf32>
    %64 = vector.multi_reduction <add>, %63, %cst_45 [1] : vector<1x128xf32> to vector<1xf32>
    %65 = vector.shape_cast %64 : vector<1xf32> to vector<1x1xf32>
    %66 = vector.broadcast %65 : vector<1x1xf32> to vector<1x128xf32>
    %67 = arith.divf %63, %66 : vector<1x128xf32>
    %c1_46 = arith.constant 1 : index
    %c0_47 = arith.constant 0 : index
    %68 = vector.load %arg8[%c1_46, %c0_47] : memref<2x128xf32, #tpu.memory_space<vmem>>, vector<1x128xf32>
    tpu.vector_store %arg8[%c1_46, %c0_47], %67 {strides = array<i32>} : memref<2x128xf32, #tpu.memory_space<vmem>>, vector<1x128xf32>,
    return
  }
}

</mosaic_0001>

<llo_original>
// kernel: cwru_forward.1
$region0: #{cwru_forward.1}
  #allocation0 [shape = 'u32[]', space=smem, size = 0x4, offset = 0x4, fixed_abs, tag = 'smem constant byte address 0x4 - core index']
  #allocation1 [shape = 'u32[144,128]{1,0:T(1,128)}', space=vmem, size = 0x12000, scoped, tag = 'internal scratch']
  %s0 = inlined_call_operand.vmem [shape: f32[8,512], index: 0, kind: input, shape index: {}]
  %s1 = inlined_call_operand.vmem [shape: f32[128,8], index: 1, kind: input, shape index: {}]
  %s2 = inlined_call_operand.vmem [shape: f32[8,128], index: 2, kind: input, shape index: {}]
  %s3 = inlined_call_operand.vmem [shape: f32[256,128], index: 3, kind: input, shape index: {}]
  %s4 = inlined_call_operand.vmem [shape: f32[2,128], index: 4, kind: input, shape index: {}]
  %s5 = inlined_call_operand.vmem [shape: f32[128,32], index: 5, kind: input, shape index: {}]
  %s6 = inlined_call_operand.vmem [shape: f32[128,128], index: 6, kind: input, shape index: {}]
  %s7 = inlined_call_operand.vmem [shape: f32[1,128], index: 7, kind: input, shape index: {}]
  %s8 = inlined_call_operand.hbm [shape: f32[2,128], index: 8, kind: output, shape index: {}]
  %s9 = sld [smem:[#allocation0]]
  $region42: #{cwru_forward.1} parent=0
    _
  %s11 = ssub.s32 1, %s9
  %s12 = scalar_select 0, %s11, %s9
  $region1: #{cwru_forward.1} parent=0
    #allocation2 [shape = 'u8[1024]{0}', space=vmem, size = 0x400, scoped, tag = 'output window, operand 0, single buffered']
    #allocation3 [shape = 's32[1]{0}', space=sflag, size = 0x4, scoped, tag = 'scoped memory for cwru_forward.1']
    %13 = vsyncpa [#allocation3], 0
    // Predicated region
    $region2: #{cwru_forward.1} parent=1 // pred_check
      _
    $region3: #{cwru_forward.1} parent=1 // pred_check_branch
      %15 = sbr.rel (0) target = $region5
    $region4: #{cwru_forward.1} parent=1 // pred_region
      _
    $region5: #{cwru_forward.1} parent=1 // pred_fallthru
      _
    // Predicated region
    $region6: #{cwru_forward.1} parent=1 // pred_check
      _
    $region7: #{cwru_forward.1} parent=1 // pred_check_branch
      %17 = sbr.rel (0) target = $region9
    $region8: #{cwru_forward.1} parent=1 // pred_region
      _
    $region9: #{cwru_forward.1} parent=1 // pred_fallthru
      _
    // Predicated region
    $region10: #{cwru_forward.1} parent=1 // pred_check
      _
    $region11: #{cwru_forward.1} parent=1 // pred_check_branch
      %19 = sbr.rel (0) target = $region13
    $region12: #{cwru_forward.1} parent=1 // pred_region
      _
    $region13: #{cwru_forward.1} parent=1 // pred_fallthru
      _
    // Predicated region
    $region14: #{cwru_forward.1} parent=1 // pred_check
      _
    $region15: #{cwru_forward.1} parent=1 // pred_check_branch
      %21 = sbr.rel (0) target = $region17
    $region16: #{cwru_forward.1} parent=1 // pred_region
      _
    $region17: #{cwru_forward.1} parent=1 // pred_fallthru
      _
    // Predicated region
    $region18: #{cwru_forward.1} parent=1 // pred_check
      _
    $region19: #{cwru_forward.1} parent=1 // pred_check_branch
      %23 = sbr.rel (0) target = $region21
    $region20: #{cwru_forward.1} parent=1 // pred_region
      _
    $region21: #{cwru_forward.1} parent=1 // pred_fallthru
      _
    // Predicated region
    $region22: #{cwru_forward.1} parent=1 // pred_check
      _
    $region23: #{cwru_forward.1} parent=1 // pred_check_branch
      %25 = sbr.rel (0) target = $region25
    $region24: #{cwru_forward.1} parent=1 // pred_region
      _
    $region25: #{cwru_forward.1} parent=1 // pred_fallthru
      _
    // Predicated region
    $region26: #{cwru_forward.1} parent=1 // pred_check
      _
    $region27: #{cwru_forward.1} parent=1 // pred_check_branch
      %27 = sbr.rel (0) target = $region29
    $region28: #{cwru_forward.1} parent=1 // pred_region
      _
    $region29: #{cwru_forward.1} parent=1 // pred_fallthru
      _
    // Predicated region
    $region30: #{cwru_forward.1} parent=1 // pred_check
      _
    $region31: #{cwru_forward.1} parent=1 // pred_check_branch
      %29 = sbr.rel (0) target = $region33
    $region32: #{cwru_forward.1} parent=1 // pred_region
      _
    $region33: #{cwru_forward.1} parent=1 // pred_fallthru
      _
    %v30 = vld [vmem:[%s1] sm:$0xff]
    %v31 = vld [vmem:[%s1 + $0x8] sm:$0xff]
    %v32 = vld [vmem:[%s1 + $0x10] sm:$0xff]
    %v33 = vld [vmem:[%s1 + $0x18] sm:$0xff]
    %v34 = vld [vmem:[%s1 + $0x20] sm:$0xff]
    %v35 = vld [vmem:[%s1 + $0x28] sm:$0xff]
    %v36 = vld [vmem:[%s1 + $0x30] sm:$0xff]
    %v37 = vld [vmem:[%s1 + $0x38] sm:$0xff]
    %v38 = vld [vmem:[%s1 + $0x40] sm:$0xff]
    %v39 = vld [vmem:[%s1 + $0x48] sm:$0xff]
    %v40 = vld [vmem:[%s1 + $0x50] sm:$0xff]
    %v41 = vld [vmem:[%s1 + $0x58] sm:$0xff]
    %v42 = vld [vmem:[%s1 + $0x60] sm:$0xff]
    %v43 = vld [vmem:[%s1 + $0x68] sm:$0xff]
    %v44 = vld [vmem:[%s1 + $0x70] sm:$0xff]
    %v45 = vld [vmem:[%s1 + $0x78] sm:$0xff]
    %v46 = vld [vmem:[%s0] sm:$0xff]
    %v47 = vld [vmem:[%s0 + $0x8] sm:$0xff]
    %v48 = vld [vmem:[%s0 + $0x10] sm:$0xff]
    %v49 = vld [vmem:[%s0 + $0x18] sm:$0xff]
    %vm50 = vcmask 64512
    %v52 = vsel %vm50, %v30, 0
    %v55 = vsel %vm50, %v31, 0
    %v58 = vsel %vm50, %v32, 0
    %v61 = vsel %vm50, %v33, 0
    %v64 = vsel %vm50, %v34, 0
    %v67 = vsel %vm50, %v35, 0
    %v70 = vsel %vm50, %v36, 0
    %v73 = vsel %vm50, %v37, 0
    %v76 = vsel %vm50, %v38, 0
    %v79 = vsel %vm50, %v39, 0
    %v82 = vsel %vm50, %v40, 0
    %v85 = vsel %vm50, %v41, 0
    %v88 = vsel %vm50, %v42, 0
    %v91 = vsel %vm50, %v43, 0
    %v94 = vsel %vm50, %v44, 0
    %v97 = vsel %vm50, %v45, 0
    %99 = vmatprep.subr.mxu0 0.0
    %100 = vmatpush1.msra.mxu0 0.0
    %101 = vmatprep.subr.mxu0 0.0
    %102 = vmatpush1.msra.mxu0 0.0
    %103 = vmatprep.subr.mxu0 0.0
    %104 = vmatpush1.msra.mxu0 0.0
    %105 = vmatprep.subr.mxu0 0.0
    %106 = vmatpush1.msra.mxu0 0.0
    %107 = vmatprep.subr.mxu0 0.0
    %108 = vmatpush1.msra.mxu0 0.0
    %109 = vmatprep.subr.mxu0 0.0
    %110 = vmatpush1.msra.mxu0 0.0
    %111 = vmatprep.subr.mxu0 0.0
    %112 = vmatpush1.msra.mxu0 0.0
    %113 = vmatprep.subr.mxu0 0.0
    %114 = vmatpush1.msra.mxu0 0.0
    %115 = vmatprep.subr.mxu0 0.0
    %116 = vmatpush1.msra.mxu0 0.0
    %117 = vmatprep.subr.mxu0 0.0
    %118 = vmatpush1.msra.mxu0 0.0
    %119 = vmatprep.subr.mxu0 0.0
    %120 = vmatpush1.msra.mxu0 0.0
    %121 = vmatprep.subr.mxu0 0.0
    %122 = vmatpush1.msra.mxu0 0.0
    %123 = vmatprep.subr.mxu0 0.0
    %124 = vmatpush1.msra.mxu0 0.0
    %125 = vmatprep.subr.mxu0 0.0
    %126 = vmatpush1.msra.mxu0 0.0
    %127 = vmatprep.subr.mxu0 0.0
    %128 = vmatpush1.msra.mxu0 0.0
    %129 = vmatprep.subr.mxu0 %v47
    %130 = vmatpush1.msra.mxu0 %v46
    %131 = vmatprep.subr.mxu0 0.0
    %132 = vmatpush2.msra.mxu0 0.0
    %133 = vmatprep.subr.mxu0 0.0
    %134 = vmatpush2.msra.mxu0 0.0
    %135 = vmatprep.subr.mxu0 0.0
    %136 = vmatpush2.msra.mxu0 0.0
    %137 = vmatprep.subr.mxu0 0.0
    %138 = vmatpush2.msra.mxu0 0.0
    %139 = vmatprep.subr.mxu0 0.0
    %140 = vmatpush2.msra.mxu0 0.0
    %141 = vmatprep.subr.mxu0 0.0
    %142 = vmatpush2.msra.mxu0 0.0
    %143 = vmatprep.subr.mxu0 0.0
    %144 = vmatpush2.msra.mxu0 0.0
    %145 = vmatprep.subr.mxu0 0.0
    %146 = vmatpush2.msra.mxu0 0.0
    %147 = vmatprep.subr.mxu0 0.0
    %148 = vmatpush2.msra.mxu0 0.0
    %149 = vmatprep.subr.mxu0 0.0
    %150 = vmatpush2.msra.mxu0 0.0
    %151 = vmatprep.subr.mxu0 0.0
    %152 = vmatpush2.msra.mxu0 0.0
    %153 = vmatprep.subr.mxu0 0.0
    %154 = vmatpush2.msra.mxu0 0.0
    %155 = vmatprep.subr.mxu0 0.0
    %156 = vmatpush2.msra.mxu0 0.0
    %157 = vmatprep.subr.mxu0 0.0
    %158 = vmatpush2.msra.mxu0 0.0
    %159 = vmatprep.subr.mxu0 0.0
    %160 = vmatpush2.msra.mxu0 0.0
    %161 = vmatprep.subr.mxu0 0.0
    %162 = vmatpush2.msra.mxu0 0.0
    %163 = vmatprep.mubr.f32.mxu0 0.0
    %164 = vmatmul.mubr.f32.gmra.mxu0 %v52
    %v165 = vpop.f32.mrf.mxu0
    %v166 = vadd.f32 0.0, %v165
    %v167 = vpop.f32.mrf.mxu0
    %v168 = vadd.f32 0.0, %v167
    %169 = vmatprep.mubr.f32.mxu0 0.0
    %170 = vmatmul.mubr.f32.gmra.mxu0 %v55
    %v171 = vpop.f32.mrf.mxu0
    %v172 = vadd.f32 0.0, %v171
    %v173 = vpop.f32.mrf.mxu0
    %v174 = vadd.f32 0.0, %v173
    %175 = vmatprep.mubr.f32.mxu0 0.0
    %176 = vmatmul.mubr.f32.gmra.mxu0 %v58
    %v177 = vpop.f32.mrf.mxu0
    %v178 = vadd.f32 0.0, %v177
    %v179 = vpop.f32.mrf.mxu0
    %v180 = vadd.f32 0.0, %v179
    %181 = vmatprep.mubr.f32.mxu0 0.0
    %182 = vmatmul.mubr.f32.gmra.mxu0 %v61
    %v183 = vpop.f32.mrf.mxu0
    %v184 = vadd.f32 0.0, %v183
    %v185 = vpop.f32.mrf.mxu0
    %v186 = vadd.f32 0.0, %v185
    %187 = vmatprep.mubr.f32.mxu0 0.0
    %188 = vmatmul.mubr.f32.gmra.mxu0 %v64
    %v189 = vpop.f32.mrf.mxu0
    %v190 = vadd.f32 0.0, %v189
    %v191 = vpop.f32.mrf.mxu0
    %v192 = vadd.f32 0.0, %v191
    %193 = vmatprep.mubr.f32.mxu0 0.0
    %194 = vmatmul.mubr.f32.gmra.mxu0 %v67
    %v195 = vpop.f32.mrf.mxu0
    %v196 = vadd.f32 0.0, %v195
    %v197 = vpop.f32.mrf.mxu0
    %v198 = vadd.f32 0.0, %v197
    %199 = vmatprep.mubr.f32.mxu0 0.0
    %200 = vmatmul.mubr.f32.gmra.mxu0 %v70
    %v201 = vpop.f32.mrf.mxu0
    %v202 = vadd.f32 0.0, %v201
    %v203 = vpop.f32.mrf.mxu0
    %v204 = vadd.f32 0.0, %v203
    %205 = vmatprep.mubr.f32.mxu0 0.0
    %206 = vmatmul.mubr.f32.gmra.mxu0 %v73
    %v207 = vpop.f32.mrf.mxu0
    %v208 = vadd.f32 0.0, %v207
    %v209 = vpop.f32.mrf.mxu0
    %v210 = vadd.f32 0.0, %v209
    %211 = vmatprep.mubr.f32.mxu0 0.0
    %212 = vmatmul.mubr.f32.gmra.mxu0 %v76
    %v213 = vpop.f32.mrf.mxu0
    %v214 = vadd.f32 0.0, %v213
    %v215 = vpop.f32.mrf.mxu0
    %v216 = vadd.f32 0.0, %v215
    %217 = vmatprep.mubr.f32.mxu0 0.0
    %218 = vmatmul.mubr.f32.gmra.mxu0 %v79
    %v219 = vpop.f32.mrf.mxu0
    %v220 = vadd.f32 0.0, %v219
    %v221 = vpop.f32.mrf.mxu0
    %v222 = vadd.f32 0.0, %v221
    %223 = vmatprep.mubr.f32.mxu0 0.0
    %224 = vmatmul.mubr.f32.gmra.mxu0 %v82
    %v225 = vpop.f32.mrf.mxu0
    %v226 = vadd.f32 0.0, %v225
    %v227 = vpop.f32.mrf.mxu0
    %v228 = vadd.f32 0.0, %v227
    %229 = vmatprep.mubr.f32.mxu0 0.0
    %230 = vmatmul.mubr.f32.gmra.mxu0 %v85
    %v231 = vpop.f32.mrf.mxu0
    %v232 = vadd.f32 0.0, %v231
    %v233 = vpop.f32.mrf.mxu0
    %v234 = vadd.f32 0.0, %v233
    %235 = vmatprep.mubr.f32.mxu0 0.0
    %236 = vmatmul.mubr.f32.gmra.mxu0 %v88
    %v237 = vpop.f32.mrf.mxu0
    %v238 = vadd.f32 0.0, %v237
    %v239 = vpop.f32.mrf.mxu0
    %v240 = vadd.f32 0.0, %v239
    %241 = vmatprep.mubr.f32.mxu0 0.0
    %242 = vmatmul.mubr.f32.gmra.mxu0 %v91
    %v243 = vpop.f32.mrf.mxu0
    %v244 = vadd.f32 0.0, %v243
    %v245 = vpop.f32.mrf.mxu0
    %v246 = vadd.f32 0.0, %v245
    %247 = vmatprep.mubr.f32.mxu0 0.0
    %248 = vmatmul.mubr.f32.gmra.mxu0 %v94
    %v249 = vpop.f32.mrf.mxu0
    %v250 = vadd.f32 0.0, %v249
    %v251 = vpop.f32.mrf.mxu0
    %v252 = vadd.f32 0.0, %v251
    %253 = vmatprep.mubr.f32.mxu0 0.0
    %254 = vmatmul.mubr.f32.gmra.mxu0 %v97
    %v255 = vpop.f32.mrf.mxu0
    %v256 = vadd.f32 0.0, %v255
    %v257 = vpop.f32.mrf.mxu0
    %v258 = vadd.f32 0.0, %v257
    %259 = vdwg.mxu0
    %260 = vmatprep.subr.mxu0 0.0
    %261 = vmatpush1.msra.mxu0 0.0
    %262 = vmatprep.subr.mxu0 0.0
    %263 = vmatpush1.msra.mxu0 0.0
    %264 = vmatprep.subr.mxu0 0.0
    %265 = vmatpush1.msra.mxu0 0.0
    %266 = vmatprep.subr.mxu0 0.0
    %267 = vmatpush1.msra.mxu0 0.0
    %268 = vmatprep.subr.mxu0 0.0
    %269 = vmatpush1.msra.mxu0 0.0
    %270 = vmatprep.subr.mxu0 0.0
    %271 = vmatpush1.msra.mxu0 0.0
    %272 = vmatprep.subr.mxu0 0.0
    %273 = vmatpush1.msra.mxu0 0.0
    %274 = vmatprep.subr.mxu0 0.0
    %275 = vmatpush1.msra.mxu0 0.0
    %276 = vmatprep.subr.mxu0 0.0
    %277 = vmatpush1.msra.mxu0 0.0
    %278 = vmatprep.subr.mxu0 0.0
    %279 = vmatpush1.msra.mxu0 0.0
    %280 = vmatprep.subr.mxu0 0.0
    %281 = vmatpush1.msra.mxu0 0.0
    %282 = vmatprep.subr.mxu0 0.0
    %283 = vmatpush1.msra.mxu0 0.0
    %284 = vmatprep.subr.mxu0 0.0
    %285 = vmatpush1.msra.mxu0 0.0
    %286 = vmatprep.subr.mxu0 0.0
    %287 = vmatpush1.msra.mxu0 0.0
    %288 = vmatprep.subr.mxu0 0.0
    %289 = vmatpush1.msra.mxu0 0.0
    %290 = vmatprep.subr.mxu0 %v49
    %291 = vmatpush1.msra.mxu0 %v48
    %292 = vmatprep.subr.mxu0 0.0
    %293 = vmatpush2.msra.mxu0 0.0
    %294 = vmatprep.subr.mxu0 0.0
    %295 = vmatpush2.msra.mxu0 0.0
    %296 = vmatprep.subr.mxu0 0.0
    %297 = vmatpush2.msra.mxu0 0.0
    %298 = vmatprep.subr.mxu0 0.0
    %299 = vmatpush2.msra.mxu0 0.0
    %300 = vmatprep.subr.mxu0 0.0
    %301 = vmatpush2.msra.mxu0 0.0
    %302 = vmatprep.subr.mxu0 0.0
    %303 = vmatpush2.msra.mxu0 0.0
    %304 = vmatprep.subr.mxu0 0.0
    %305 = vmatpush2.msra.mxu0 0.0
    %306 = vmatprep.subr.mxu0 0.0
    %307 = vmatpush2.msra.mxu0 0.0
    %308 = vmatprep.subr.mxu0 0.0
    %309 = vmatpush2.msra.mxu0 0.0
    %310 = vmatprep.subr.mxu0 0.0
    %311 = vmatpush2.msra.mxu0 0.0
    %312 = vmatprep.subr.mxu0 0.0
    %313 = vmatpush2.msra.mxu0 0.0
    %314 = vmatprep.subr.mxu0 0.0
    %315 = vmatpush2.msra.mxu0 0.0
    %316 = vmatprep.subr.mxu0 0.0
    %317 = vmatpush2.msra.mxu0 0.0
    %318 = vmatprep.subr.mxu0 0.0
    %319 = vmatpush2.msra.mxu0 0.0
    %320 = vmatprep.subr.mxu0 0.0
    %321 = vmatpush2.msra.mxu0 0.0
    %322 = vmatprep.subr.mxu0 0.0
    %323 = vmatpush2.msra.mxu0 0.0
    %324 = vmatprep.mubr.f32.mxu0 0.0
    %325 = vmatmul.mubr.f32.gmra.mxu0 %v52
    %v326 = vpop.f32.mrf.mxu0
    %v327 = vadd.f32 0.0, %v326
    %v328 = vpop.f32.mrf.mxu0
    %v329 = vadd.f32 0.0, %v328
    %330 = vmatprep.mubr.f32.mxu0 0.0
    %331 = vmatmul.mubr.f32.gmra.mxu0 %v55
    %v332 = vpop.f32.mrf.mxu0
    %v333 = vadd.f32 0.0, %v332
    %v334 = vpop.f32.mrf.mxu0
    %v335 = vadd.f32 0.0, %v334
    %336 = vmatprep.mubr.f32.mxu0 0.0
    %337 = vmatmul.mubr.f32.gmra.mxu0 %v58
    %v338 = vpop.f32.mrf.mxu0
    %v339 = vadd.f32 0.0, %v338
    %v340 = vpop.f32.mrf.mxu0
    %v341 = vadd.f32 0.0, %v340
    %342 = vmatprep.mubr.f32.mxu0 0.0
    %343 = vmatmul.mubr.f32.gmra.mxu0 %v61
    %v344 = vpop.f32.mrf.mxu0
    %v345 = vadd.f32 0.0, %v344
    %v346 = vpop.f32.mrf.mxu0
    %v347 = vadd.f32 0.0, %v346
    %348 = vmatprep.mubr.f32.mxu0 0.0
    %349 = vmatmul.mubr.f32.gmra.mxu0 %v64
    %v350 = vpop.f32.mrf.mxu0
    %v351 = vadd.f32 0.0, %v350
    %v352 = vpop.f32.mrf.mxu0
    %v353 = vadd.f32 0.0, %v352
    %354 = vmatprep.mubr.f32.mxu0 0.0
    %355 = vmatmul.mubr.f32.gmra.mxu0 %v67
    %v356 = vpop.f32.mrf.mxu0
    %v357 = vadd.f32 0.0, %v356
    %v358 = vpop.f32.mrf.mxu0
    %v359 = vadd.f32 0.0, %v358
    %360 = vmatprep.mubr.f32.mxu0 0.0
    %361 = vmatmul.mubr.f32.gmra.mxu0 %v70
    %v362 = vpop.f32.mrf.mxu0
    %v363 = vadd.f32 0.0, %v362
    %v364 = vpop.f32.mrf.mxu0
    %v365 = vadd.f32 0.0, %v364
    %366 = vmatprep.mubr.f32.mxu0 0.0
    %367 = vmatmul.mubr.f32.gmra.mxu0 %v73
    %v368 = vpop.f32.mrf.mxu0
    %v369 = vadd.f32 0.0, %v368
    %v370 = vpop.f32.mrf.mxu0
    %v371 = vadd.f32 0.0, %v370
    %372 = vmatprep.mubr.f32.mxu0 0.0
    %373 = vmatmul.mubr.f32.gmra.mxu0 %v76
    %v374 = vpop.f32.mrf.mxu0
    %v375 = vadd.f32 0.0, %v374
    %v376 = vpop.f32.mrf.mxu0
    %v377 = vadd.f32 0.0, %v376
    %378 = vmatprep.mubr.f32.mxu0 0.0
    %379 = vmatmul.mubr.f32.gmra.mxu0 %v79
    %v380 = vpop.f32.mrf.mxu0
    %v381 = vadd.f32 0.0, %v380
    %v382 = vpop.f32.mrf.mxu0
    %v383 = vadd.f32 0.0, %v382
    %384 = vmatprep.mubr.f32.mxu0 0.0
    %385 = vmatmul.mubr.f32.gmra.mxu0 %v82
    %v386 = vpop.f32.mrf.mxu0
    %v387 = vadd.f32 0.0, %v386
    %v388 = vpop.f32.mrf.mxu0
    %v389 = vadd.f32 0.0, %v388
    %390 = vmatprep.mubr.f32.mxu0 0.0
    %391 = vmatmul.mubr.f32.gmra.mxu0 %v85
    %v392 = vpop.f32.mrf.mxu0
    %v393 = vadd.f32 0.0, %v392
    %v394 = vpop.f32.mrf.mxu0
    %v395 = vadd.f32 0.0, %v394
    %396 = vmatprep.mubr.f32.mxu0 0.0
    %397 = vmatmul.mubr.f32.gmra.mxu0 %v88
    %v398 = vpop.f32.mrf.mxu0
    %v399 = vadd.f32 0.0, %v398
    %v400 = vpop.f32.mrf.mxu0
    %v401 = vadd.f32 0.0, %v400
    %402 = vmatprep.mubr.f32.mxu0 0.0
    %403 = vmatmul.mubr.f32.gmra.mxu0 %v91
    %v404 = vpop.f32.mrf.mxu0
    %v405 = vadd.f32 0.0, %v404
    %v406 = vpop.f32.mrf.mxu0
    %v407 = vadd.f32 0.0, %v406
    %408 = vmatprep.mubr.f32.mxu0 0.0
    %409 = vmatmul.mubr.f32.gmra.mxu0 %v94
    %v410 = vpop.f32.mrf.mxu0
    %v411 = vadd.f32 0.0, %v410
    %v412 = vpop.f32.mrf.mxu0
    %v413 = vadd.f32 0.0, %v412
    %414 = vmatprep.mubr.f32.mxu0 0.0
    %415 = vmatmul.mubr.f32.gmra.mxu0 %v97
    %v416 = vpop.f32.mrf.mxu0
    %v417 = vadd.f32 0.0, %v416
    %v418 = vpop.f32.mrf.mxu0
    %v419 = vadd.f32 0.0, %v418
    %420 = vdwg.mxu0
    %v421 = vmax.f32 %v166, 0.0
    %v422 = vmax.f32 %v168, 0.0
    %v423 = vmax.f32 %v327, 0.0
    %v424 = vmax.f32 %v329, 0.0
    %v425 = vmax.f32 %v172, 0.0
    %v426 = vmax.f32 %v174, 0.0
    %v427 = vmax.f32 %v333, 0.0
    %v428 = vmax.f32 %v335, 0.0
    %v429 = vmax.f32 %v178, 0.0
    %v430 = vmax.f32 %v180, 0.0
    %v431 = vmax.f32 %v339, 0.0
    %v432 = vmax.f32 %v341, 0.0
    %v433 = vmax.f32 %v184, 0.0
    %v434 = vmax.f32 %v186, 0.0
    %v435 = vmax.f32 %v345, 0.0
    %v436 = vmax.f32 %v347, 0.0
    %v437 = vmax.f32 %v190, 0.0
    %v438 = vmax.f32 %v192, 0.0
    %v439 = vmax.f32 %v351, 0.0
    %v440 = vmax.f32 %v353, 0.0
    %v441 = vmax.f32 %v196, 0.0
    %v442 = vmax.f32 %v198, 0.0
    %v443 = vmax.f32 %v357, 0.0
    %v444 = vmax.f32 %v359, 0.0
    %v445 = vmax.f32 %v202, 0.0
    %v446 = vmax.f32 %v204, 0.0
    %v447 = vmax.f32 %v363, 0.0
    %v448 = vmax.f32 %v365, 0.0
    %v449 = vmax.f32 %v208, 0.0
    %v450 = vmax.f32 %v210, 0.0
    %v451 = vmax.f32 %v369, 0.0
    %v452 = vmax.f32 %v371, 0.0
    %v453 = vmax.f32 %v214, 0.0
    %v454 = vmax.f32 %v216, 0.0
    %v455 = vmax.f32 %v375, 0.0
    %v456 = vmax.f32 %v377, 0.0
    %v457 = vmax.f32 %v220, 0.0
    %v458 = vmax.f32 %v222, 0.0
    %v459 = vmax.f32 %v381, 0.0
    %v460 = vmax.f32 %v383, 0.0
    %v461 = vmax.f32 %v226, 0.0
    %v462 = vmax.f32 %v228, 0.0
    %v463 = vmax.f32 %v387, 0.0
    %v464 = vmax.f32 %v389, 0.0
    %v465 = vmax.f32 %v232, 0.0
    %v466 = vmax.f32 %v234, 0.0
    %v467 = vmax.f32 %v393, 0.0
    %v468 = vmax.f32 %v395, 0.0
    %v469 = vmax.f32 %v238, 0.0
    %v470 = vmax.f32 %v240, 0.0
    %v471 = vmax.f32 %v399, 0.0
    %v472 = vmax.f32 %v401, 0.0
    %v473 = vmax.f32 %v244, 0.0
    %v474 = vmax.f32 %v246, 0.0
    %v475 = vmax.f32 %v405, 0.0
    %v476 = vmax.f32 %v407, 0.0
    %v477 = vmax.f32 %v250, 0.0
    %v478 = vmax.f32 %v252, 0.0
    %v479 = vmax.f32 %v411, 0.0
    %v480 = vmax.f32 %v413, 0.0
    %v481 = vmax.f32 %v256, 0.0
    %v482 = vmax.f32 %v258, 0.0
    %v483 = vmax.f32 %v417, 0.0
    %v484 = vmax.f32 %v419, 0.0
    %v485 = vld [vmem:[%s2] sm:$0xff]
    %486 = vmatprep.subr.mxu0 %v482
    %487 = vmatpush1.msra.mxu0 %v481
    %488 = vmatprep.subr.mxu0 %v478
    %489 = vmatpush1.msra.mxu0 %v477
    %490 = vmatprep.subr.mxu0 %v474
    %491 = vmatpush1.msra.mxu0 %v473
    %492 = vmatprep.subr.mxu0 %v470
    %493 = vmatpush1.msra.mxu0 %v469
    %494 = vmatprep.subr.mxu0 %v466
    %495 = vmatpush1.msra.mxu0 %v465
    %496 = vmatprep.subr.mxu0 %v462
    %497 = vmatpush1.msra.mxu0 %v461
    %498 = vmatprep.subr.mxu0 %v458
    %499 = vmatpush1.msra.mxu0 %v457
    %500 = vmatprep.subr.mxu0 %v454
    %501 = vmatpush1.msra.mxu0 %v453
    %502 = vmatprep.subr.mxu0 %v450
    %503 = vmatpush1.msra.mxu0 %v449
    %504 = vmatprep.subr.mxu0 %v446
    %505 = vmatpush1.msra.mxu0 %v445
    %506 = vmatprep.subr.mxu0 %v442
    %507 = vmatpush1.msra.mxu0 %v441
    %508 = vmatprep.subr.mxu0 %v438
    %509 = vmatpush1.msra.mxu0 %v437
    %510 = vmatprep.subr.mxu0 %v434
    %511 = vmatpush1.msra.mxu0 %v433
    %512 = vmatprep.subr.mxu0 %v430
    %513 = vmatpush1.msra.mxu0 %v429
    %514 = vmatprep.subr.mxu0 %v426
    %515 = vmatpush1.msra.mxu0 %v425
    %516 = vmatprep.subr.mxu0 %v422
    %517 = vmatpush1.msra.mxu0 %v421
    %518 = vmatprep.subr.mxu0 0.0
    %519 = vmatpush2.msra.mxu0 0.0
    %520 = vmatprep.subr.mxu0 0.0
    %521 = vmatpush2.msra.mxu0 0.0
    %522 = vmatprep.subr.mxu0 0.0
    %523 = vmatpush2.msra.mxu0 0.0
    %524 = vmatprep.subr.mxu0 0.0
    %525 = vmatpush2.msra.mxu0 0.0
    %526 = vmatprep.subr.mxu0 0.0
    %527 = vmatpush2.msra.mxu0 0.0
    %528 = vmatprep.subr.mxu0 0.0
    %529 = vmatpush2.msra.mxu0 0.0
    %530 = vmatprep.subr.mxu0 0.0
    %531 = vmatpush2.msra.mxu0 0.0
    %532 = vmatprep.subr.mxu0 0.0
    %533 = vmatpush2.msra.mxu0 0.0
    %534 = vmatprep.subr.mxu0 0.0
    %535 = vmatpush2.msra.mxu0 0.0
    %536 = vmatprep.subr.mxu0 0.0
    %537 = vmatpush2.msra.mxu0 0.0
    %538 = vmatprep.subr.mxu0 0.0
    %539 = vmatpush2.msra.mxu0 0.0
    %540 = vmatprep.subr.mxu0 0.0
    %541 = vmatpush2.msra.mxu0 0.0
    %542 = vmatprep.subr.mxu0 0.0
    %543 = vmatpush2.msra.mxu0 0.0
    %544 = vmatprep.subr.mxu0 0.0
    %545 = vmatpush2.msra.mxu0 0.0
    %546 = vmatprep.subr.mxu0 0.0
    %547 = vmatpush2.msra.mxu0 0.0
    %548 = vmatprep.subr.mxu0 0.0
    %549 = vmatpush2.msra.mxu0 0.0
    %550 = vmatprep.mubr.f32.mxu0 0.0
    %551 = vmatmul.mubr.f32.gmra.mxu0 %v485
    %v552 = vpop.f32.mrf.mxu0
    %v553 = vadd.f32 0.0, %v552
    %v554 = vpop.f32.mrf.mxu0
    %v555 = vadd.f32 0.0, %v554
    %556 = vdwg.mxu0
    %557 = vmatprep.subr.mxu0 %v484
    %558 = vmatpush1.msra.mxu0 %v483
    %559 = vmatprep.subr.mxu0 %v480
    %560 = vmatpush1.msra.mxu0 %v479
    %561 = vmatprep.subr.mxu0 %v476
    %562 = vmatpush1.msra.mxu0 %v475
    %563 = vmatprep.subr.mxu0 %v472
    %564 = vmatpush1.msra.mxu0 %v471
    %565 = vmatprep.subr.mxu0 %v468
    %566 = vmatpush1.msra.mxu0 %v467
    %567 = vmatprep.subr.mxu0 %v464
    %568 = vmatpush1.msra.mxu0 %v463
    %569 = vmatprep.subr.mxu0 %v460
    %570 = vmatpush1.msra.mxu0 %v459
    %571 = vmatprep.subr.mxu0 %v456
    %572 = vmatpush1.msra.mxu0 %v455
    %573 = vmatprep.subr.mxu0 %v452
    %574 = vmatpush1.msra.mxu0 %v451
    %575 = vmatprep.subr.mxu0 %v448
    %576 = vmatpush1.msra.mxu0 %v447
    %577 = vmatprep.subr.mxu0 %v444
    %578 = vmatpush1.msra.mxu0 %v443
    %579 = vmatprep.subr.mxu0 %v440
    %580 = vmatpush1.msra.mxu0 %v439
    %581 = vmatprep.subr.mxu0 %v436
    %582 = vmatpush1.msra.mxu0 %v435
    %583 = vmatprep.subr.mxu0 %v432
    %584 = vmatpush1.msra.mxu0 %v431
    %585 = vmatprep.subr.mxu0 %v428
    %586 = vmatpush1.msra.mxu0 %v427
    %587 = vmatprep.subr.mxu0 %v424
    %588 = vmatpush1.msra.mxu0 %v423
    %589 = vmatprep.subr.mxu0 0.0
    %590 = vmatpush2.msra.mxu0 0.0
    %591 = vmatprep.subr.mxu0 0.0
    %592 = vmatpush2.msra.mxu0 0.0
    %593 = vmatprep.subr.mxu0 0.0
    %594 = vmatpush2.msra.mxu0 0.0
    %595 = vmatprep.subr.mxu0 0.0
    %596 = vmatpush2.msra.mxu0 0.0
    %597 = vmatprep.subr.mxu0 0.0
    %598 = vmatpush2.msra.mxu0 0.0
    %599 = vmatprep.subr.mxu0 0.0
    %600 = vmatpush2.msra.mxu0 0.0
    %601 = vmatprep.subr.mxu0 0.0
    %602 = vmatpush2.msra.mxu0 0.0
    %603 = vmatprep.subr.mxu0 0.0
    %604 = vmatpush2.msra.mxu0 0.0
    %605 = vmatprep.subr.mxu0 0.0
    %606 = vmatpush2.msra.mxu0 0.0
    %607 = vmatprep.subr.mxu0 0.0
    %608 = vmatpush2.msra.mxu0 0.0
    %609 = vmatprep.subr.mxu0 0.0
    %610 = vmatpush2.msra.mxu0 0.0
    %611 = vmatprep.subr.mxu0 0.0
    %612 = vmatpush2.msra.mxu0 0.0
    %613 = vmatprep.subr.mxu0 0.0
    %614 = vmatpush2.msra.mxu0 0.0
    %615 = vmatprep.subr.mxu0 0.0
    %616 = vmatpush2.msra.mxu0 0.0
    %617 = vmatprep.subr.mxu0 0.0
    %618 = vmatpush2.msra.mxu0 0.0
    %619 = vmatprep.subr.mxu0 0.0
    %620 = vmatpush2.msra.mxu0 0.0
    %621 = vmatprep.mubr.f32.mxu0 0.0
    %622 = vmatmul.mubr.f32.gmra.mxu0 %v485
    %v623 = vpop.f32.mrf.mxu0
    %v624 = vadd.f32 0.0, %v623
    %v625 = vpop.f32.mrf.mxu0
    %v626 = vadd.f32 0.0, %v625
    %627 = vdwg.mxu0
    %v628 = vld [vmem:[%s4] sm:$0x1]
    %v629 = vld [vmem:[%s4 + $0x1] sm:$0x1]
    %v630 = vld [vmem:[%s3] sm:$0xff]
    %v631 = vld [vmem:[%s3 + $0x8] sm:$0xff]
    %v632 = vld [vmem:[%s3 + $0x10] sm:$0xff]
    %v633 = vld [vmem:[%s3 + $0x18] sm:$0xff]
    %v634 = vld [vmem:[%s3 + $0x20] sm:$0xff]
    %v635 = vld [vmem:[%s3 + $0x28] sm:$0xff]
    %v636 = vld [vmem:[%s3 + $0x30] sm:$0xff]
    %v637 = vld [vmem:[%s3 + $0x38] sm:$0xff]
    %v638 = vld [vmem:[%s3 + $0x40] sm:$0xff]
    %v639 = vld [vmem:[%s3 + $0x48] sm:$0xff]
    %v640 = vld [vmem:[%s3 + $0x50] sm:$0xff]
    %v641 = vld [vmem:[%s3 + $0x58] sm:$0xff]
    %v642 = vld [vmem:[%s3 + $0x60] sm:$0xff]
    %v643 = vld [vmem:[%s3 + $0x68] sm:$0xff]
    %v644 = vld [vmem:[%s3 + $0x70] sm:$0xff]
    %v645 = vld [vmem:[%s3 + $0x78] sm:$0xff]
    %v646 = vld [vmem:[%s3 + $0x80] sm:$0xff]
    %v647 = vld [vmem:[%s3 + $0x88] sm:$0xff]
    %v648 = vld [vmem:[%s3 + $0x90] sm:$0xff]
    %v649 = vld [vmem:[%s3 + $0x98] sm:$0xff]
    %v650 = vld [vmem:[%s3 + $0xa0] sm:$0xff]
    %v651 = vld [vmem:[%s3 + $0xa8] sm:$0xff]
    %v652 = vld [vmem:[%s3 + $0xb0] sm:$0xff]
    %v653 = vld [vmem:[%s3 + $0xb8] sm:$0xff]
    %v654 = vld [vmem:[%s3 + $0xc0] sm:$0xff]
    %v655 = vld [vmem:[%s3 + $0xc8] sm:$0xff]
    %v656 = vld [vmem:[%s3 + $0xd0] sm:$0xff]
    %v657 = vld [vmem:[%s3 + $0xd8] sm:$0xff]
    %v658 = vld [vmem:[%s3 + $0xe0] sm:$0xff]
    %v659 = vld [vmem:[%s3 + $0xe8] sm:$0xff]
    %v660 = vld [vmem:[%s3 + $0xf0] sm:$0xff]
    %v661 = vld [vmem:[%s3 + $0xf8] sm:$0xff]
    %662 = vmatprep.subr.mxu0 0.0
    %663 = vmatpush1.msra.mxu0 %v645
    %664 = vmatprep.subr.mxu0 0.0
    %665 = vmatpush1.msra.mxu0 %v644
    %666 = vmatprep.subr.mxu0 0.0
    %667 = vmatpush1.msra.mxu0 %v643
    %668 = vmatprep.subr.mxu0 0.0
    %669 = vmatpush1.msra.mxu0 %v642
    %670 = vmatprep.subr.mxu0 0.0
    %671 = vmatpush1.msra.mxu0 %v641
    %672 = vmatprep.subr.mxu0 0.0
    %673 = vmatpush1.msra.mxu0 %v640
    %674 = vmatprep.subr.mxu0 0.0
    %675 = vmatpush1.msra.mxu0 %v639
    %676 = vmatprep.subr.mxu0 0.0
    %677 = vmatpush1.msra.mxu0 %v638
    %678 = vmatprep.subr.mxu0 0.0
    %679 = vmatpush1.msra.mxu0 %v637
    %680 = vmatprep.subr.mxu0 0.0
    %681 = vmatpush1.msra.mxu0 %v636
    %682 = vmatprep.subr.mxu0 0.0
    %683 = vmatpush1.msra.mxu0 %v635
    %684 = vmatprep.subr.mxu0 0.0
    %685 = vmatpush1.msra.mxu0 %v634
    %686 = vmatprep.subr.mxu0 0.0
    %687 = vmatpush1.msra.mxu0 %v633
    %688 = vmatprep.subr.mxu0 0.0
    %689 = vmatpush1.msra.mxu0 %v632
    %690 = vmatprep.subr.mxu0 0.0
    %691 = vmatpush1.msra.mxu0 %v631
    %692 = vmatprep.subr.mxu0 0.0
    %693 = vmatpush1.msra.mxu0 %v630
    %694 = vmatprep.subr.mxu0 0.0
    %695 = vmatpush2.msra.mxu0 %v661
    %696 = vmatprep.subr.mxu0 0.0
    %697 = vmatpush2.msra.mxu0 %v660
    %698 = vmatprep.subr.mxu0 0.0
    %699 = vmatpush2.msra.mxu0 %v659
    %700 = vmatprep.subr.mxu0 0.0
    %701 = vmatpush2.msra.mxu0 %v658
    %702 = vmatprep.subr.mxu0 0.0
    %703 = vmatpush2.msra.mxu0 %v657
    %704 = vmatprep.subr.mxu0 0.0
    %705 = vmatpush2.msra.mxu0 %v656
    %706 = vmatprep.subr.mxu0 0.0
    %707 = vmatpush2.msra.mxu0 %v655
    %708 = vmatprep.subr.mxu0 0.0
    %709 = vmatpush2.msra.mxu0 %v654
    %710 = vmatprep.subr.mxu0 0.0
    %711 = vmatpush2.msra.mxu0 %v653
    %712 = vmatprep.subr.mxu0 0.0
    %713 = vmatpush2.msra.mxu0 %v652
    %714 = vmatprep.subr.mxu0 0.0
    %715 = vmatpush2.msra.mxu0 %v651
    %716 = vmatprep.subr.mxu0 0.0
    %717 = vmatpush2.msra.mxu0 %v650
    %718 = vmatprep.subr.mxu0 0.0
    %719 = vmatpush2.msra.mxu0 %v649
    %720 = vmatprep.subr.mxu0 0.0
    %721 = vmatpush2.msra.mxu0 %v648
    %722 = vmatprep.subr.mxu0 0.0
    %723 = vmatpush2.msra.mxu0 %v647
    %724 = vmatprep.subr.mxu0 0.0
    %725 = vmatpush2.msra.mxu0 %v646
    %726 = vmatprep.mubr.f32.mxu0 %v555
    %727 = vmatmul.mubr.f32.gmra.mxu0 %v553
    %v728 = vpop.f32.mrf.mxu0
    %v729 = vadd.f32 0.0, %v728
    %v730 = vpop.f32.mrf.mxu0
    %731 = vdwg.mxu0
    %732 = vrot.lane.b32.xlu0 %v729, 1
    %v733 = vpop.permute.xlu0 %732
    %v734 = vlaneseq
    %v735 = vshrl.u32 %v734, 7
    %v736 = vsub.s32 0, %v735
    %v737 = vrot.slane %v628, %v736
    %v738 = vmul.f32 %v737, %v733
    %739 = vrot.lane.b32.xlu0 %v729, 127
    %v740 = vpop.permute.xlu0 %739
    %v741 = vlaneseq
    %v742 = vshrl.u32 %v741, 7
    %v743 = vsub.s32 0, %v742
    %v744 = vrot.slane %v629, %v743
    %v745 = vmul.f32 %v744, %v740
    %v746 = vld [vmem:[%s5] sm:$0xff]
    %v747 = vld [vmem:[%s5 + $0x8] sm:$0xff]
    %v748 = vld [vmem:[%s5 + $0x10] sm:$0xff]
    %v749 = vld [vmem:[%s5 + $0x18] sm:$0xff]
    %v750 = vld [vmem:[%s5 + $0x20] sm:$0xff]
    %v751 = vld [vmem:[%s5 + $0x28] sm:$0xff]
    %v752 = vld [vmem:[%s5 + $0x30] sm:$0xff]
    %v753 = vld [vmem:[%s5 + $0x38] sm:$0xff]
    %v754 = vld [vmem:[%s5 + $0x40] sm:$0xff]
    %v755 = vld [vmem:[%s5 + $0x48] sm:$0xff]
    %v756 = vld [vmem:[%s5 + $0x50] sm:$0xff]
    %v757 = vld [vmem:[%s5 + $0x58] sm:$0xff]
    %v758 = vld [vmem:[%s5 + $0x60] sm:$0xff]
    %v759 = vld [vmem:[%s5 + $0x68] sm:$0xff]
    %v760 = vld [vmem:[%s5 + $0x70] sm:$0xff]
    %v761 = vld [vmem:[%s5 + $0x78] sm:$0xff]
    %vm762 = vcmask 261120
    %v764 = vsel %vm762, %v746, 0
    %v767 = vsel %vm762, %v747, 0
    %v770 = vsel %vm762, %v748, 0
    %v773 = vsel %vm762, %v749, 0
    %v776 = vsel %vm762, %v750, 0
    %v779 = vsel %vm762, %v751, 0
    %v782 = vsel %vm762, %v752, 0
    %v785 = vsel %vm762, %v753, 0
    %v788 = vsel %vm762, %v754, 0
    %v791 = vsel %vm762, %v755, 0
    %v794 = vsel %vm762, %v756, 0
    %v797 = vsel %vm762, %v757, 0
    %v800 = vsel %vm762, %v758, 0
    %v803 = vsel %vm762, %v759, 0
    %v806 = vsel %vm762, %v760, 0
    %v809 = vsel %vm762, %v761, 0
    %811 = vmatprep.subr.mxu0 0.0
    %812 = vmatpush1.msra.mxu0 0.0
    %813 = vmatprep.subr.mxu0 0.0
    %814 = vmatpush1.msra.mxu0 0.0
    %815 = vmatprep.subr.mxu0 0.0
    %816 = vmatpush1.msra.mxu0 0.0
    %817 = vmatprep.subr.mxu0 0.0
    %818 = vmatpush1.msra.mxu0 0.0
    %819 = vmatprep.subr.mxu0 0.0
    %820 = vmatpush1.msra.mxu0 0.0
    %821 = vmatprep.subr.mxu0 0.0
    %822 = vmatpush1.msra.mxu0 0.0
    %823 = vmatprep.subr.mxu0 0.0
    %824 = vmatpush1.msra.mxu0 0.0
    %825 = vmatprep.subr.mxu0 0.0
    %826 = vmatpush1.msra.mxu0 0.0
    %827 = vmatprep.subr.mxu0 0.0
    %828 = vmatpush1.msra.mxu0 0.0
    %829 = vmatprep.subr.mxu0 0.0
    %830 = vmatpush1.msra.mxu0 0.0
    %831 = vmatprep.subr.mxu0 0.0
    %832 = vmatpush1.msra.mxu0 0.0
    %833 = vmatprep.subr.mxu0 0.0
    %834 = vmatpush1.msra.mxu0 0.0
    %835 = vmatprep.subr.mxu0 0.0
    %836 = vmatpush1.msra.mxu0 1.0
    %837 = vmatprep.subr.mxu0 0.0
    %838 = vmatpush1.msra.mxu0 %v745
    %839 = vmatprep.subr.mxu0 0.0
    %840 = vmatpush1.msra.mxu0 %v729
    %841 = vmatprep.subr.mxu0 0.0
    %842 = vmatpush1.msra.mxu0 %v738
    %843 = vmatprep.subr.mxu0 0.0
    %844 = vmatpush2.msra.mxu0 0.0
    %845 = vmatprep.subr.mxu0 0.0
    %846 = vmatpush2.msra.mxu0 0.0
    %847 = vmatprep.subr.mxu0 0.0
    %848 = vmatpush2.msra.mxu0 0.0
    %849 = vmatprep.subr.mxu0 0.0
    %850 = vmatpush2.msra.mxu0 0.0
    %851 = vmatprep.subr.mxu0 0.0
    %852 = vmatpush2.msra.mxu0 0.0
    %853 = vmatprep.subr.mxu0 0.0
    %854 = vmatpush2.msra.mxu0 0.0
    %855 = vmatprep.subr.mxu0 0.0
    %856 = vmatpush2.msra.mxu0 0.0
    %857 = vmatprep.subr.mxu0 0.0
    %858 = vmatpush2.msra.mxu0 0.0
    %859 = vmatprep.subr.mxu0 0.0
    %860 = vmatpush2.msra.mxu0 0.0
    %861 = vmatprep.subr.mxu0 0.0
    %862 = vmatpush2.msra.mxu0 0.0
    %863 = vmatprep.subr.mxu0 0.0
    %864 = vmatpush2.msra.mxu0 0.0
    %865 = vmatprep.subr.mxu0 0.0
    %866 = vmatpush2.msra.mxu0 0.0
    %867 = vmatprep.subr.mxu0 0.0
    %868 = vmatpush2.msra.mxu0 0.0
    %869 = vmatprep.subr.mxu0 0.0
    %870 = vmatpush2.msra.mxu0 0.0
    %871 = vmatprep.subr.mxu0 0.0
    %872 = vmatpush2.msra.mxu0 0.0
    %873 = vmatprep.subr.mxu0 0.0
    %874 = vmatpush2.msra.mxu0 0.0
    %875 = vmatprep.mubr.f32.mxu0 0.0
    %876 = vmatmul.mubr.f32.gmra.mxu0 %v764
    %v877 = vpop.f32.mrf.mxu0
    %v878 = vadd.f32 0.0, %v877
    %v879 = vpop.f32.mrf.mxu0
    %880 = vmatprep.mubr.f32.mxu0 0.0
    %881 = vmatmul.mubr.f32.gmra.mxu0 %v767
    %v882 = vpop.f32.mrf.mxu0
    %v883 = vadd.f32 0.0, %v882
    %v884 = vpop.f32.mrf.mxu0
    %885 = vmatprep.mubr.f32.mxu0 0.0
    %886 = vmatmul.mubr.f32.gmra.mxu0 %v770
    %v887 = vpop.f32.mrf.mxu0
    %v888 = vadd.f32 0.0, %v887
    %v889 = vpop.f32.mrf.mxu0
    %890 = vmatprep.mubr.f32.mxu0 0.0
    %891 = vmatmul.mubr.f32.gmra.mxu0 %v773
    %v892 = vpop.f32.mrf.mxu0
    %v893 = vadd.f32 0.0, %v892
    %v894 = vpop.f32.mrf.mxu0
    %895 = vmatprep.mubr.f32.mxu0 0.0
    %896 = vmatmul.mubr.f32.gmra.mxu0 %v776
    %v897 = vpop.f32.mrf.mxu0
    %v898 = vadd.f32 0.0, %v897
    %v899 = vpop.f32.mrf.mxu0
    %900 = vmatprep.mubr.f32.mxu0 0.0
    %901 = vmatmul.mubr.f32.gmra.mxu0 %v779
    %v902 = vpop.f32.mrf.mxu0
    %v903 = vadd.f32 0.0, %v902
    %v904 = vpop.f32.mrf.mxu0
    %905 = vmatprep.mubr.f32.mxu0 0.0
    %906 = vmatmul.mubr.f32.gmra.mxu0 %v782
    %v907 = vpop.f32.mrf.mxu0
    %v908 = vadd.f32 0.0, %v907
    %v909 = vpop.f32.mrf.mxu0
    %910 = vmatprep.mubr.f32.mxu0 0.0
    %911 = vmatmul.mubr.f32.gmra.mxu0 %v785
    %v912 = vpop.f32.mrf.mxu0
    %v913 = vadd.f32 0.0, %v912
    %v914 = vpop.f32.mrf.mxu0
    %915 = vmatprep.mubr.f32.mxu0 0.0
    %916 = vmatmul.mubr.f32.gmra.mxu0 %v788
    %v917 = vpop.f32.mrf.mxu0
    %v918 = vadd.f32 0.0, %v917
    %v919 = vpop.f32.mrf.mxu0
    %920 = vmatprep.mubr.f32.mxu0 0.0
    %921 = vmatmul.mubr.f32.gmra.mxu0 %v791
    %v922 = vpop.f32.mrf.mxu0
    %v923 = vadd.f32 0.0, %v922
    %v924 = vpop.f32.mrf.mxu0
    %925 = vmatprep.mubr.f32.mxu0 0.0
    %926 = vmatmul.mubr.f32.gmra.mxu0 %v794
    %v927 = vpop.f32.mrf.mxu0
    %v928 = vadd.f32 0.0, %v927
    %v929 = vpop.f32.mrf.mxu0
    %930 = vmatprep.mubr.f32.mxu0 0.0
    %931 = vmatmul.mubr.f32.gmra.mxu0 %v797
    %v932 = vpop.f32.mrf.mxu0
    %v933 = vadd.f32 0.0, %v932
    %v934 = vpop.f32.mrf.mxu0
    %935 = vmatprep.mubr.f32.mxu0 0.0
    %936 = vmatmul.mubr.f32.gmra.mxu0 %v800
    %v937 = vpop.f32.mrf.mxu0
    %v938 = vadd.f32 0.0, %v937
    %v939 = vpop.f32.mrf.mxu0
    %940 = vmatprep.mubr.f32.mxu0 0.0
    %941 = vmatmul.mubr.f32.gmra.mxu0 %v803
    %v942 = vpop.f32.mrf.mxu0
    %v943 = vadd.f32 0.0, %v942
    %v944 = vpop.f32.mrf.mxu0
    %945 = vmatprep.mubr.f32.mxu0 0.0
    %946 = vmatmul.mubr.f32.gmra.mxu0 %v806
    %v947 = vpop.f32.mrf.mxu0
    %v948 = vadd.f32 0.0, %v947
    %v949 = vpop.f32.mrf.mxu0
    %950 = vmatprep.mubr.f32.mxu0 0.0
    %951 = vmatmul.mubr.f32.gmra.mxu0 %v809
    %v952 = vpop.f32.mrf.mxu0
    %v953 = vadd.f32 0.0, %v952
    %v954 = vpop.f32.mrf.mxu0
    %955 = vdwg.mxu0
    %v956 = vmax.f32 %v878, 0.0
    %v957 = vmax.f32 %v883, 0.0
    %v958 = vmax.f32 %v888, 0.0
    %v959 = vmax.f32 %v893, 0.0
    %v960 = vmax.f32 %v898, 0.0
    %v961 = vmax.f32 %v903, 0.0
    %v962 = vmax.f32 %v908, 0.0
    %v963 = vmax.f32 %v913, 0.0
    %v964 = vmax.f32 %v918, 0.0
    %v965 = vmax.f32 %v923, 0.0
    %v966 = vmax.f32 %v928, 0.0
    %v967 = vmax.f32 %v933, 0.0
    %v968 = vmax.f32 %v938, 0.0
    %v969 = vmax.f32 %v943, 0.0
    %v970 = vmax.f32 %v948, 0.0
    %v971 = vmax.f32 %v953, 0.0
    %972 = vmatprep.subr.mxu0 0.0
    %973 = vmatpush1.msra.mxu0 %v971
    %974 = vmatprep.subr.mxu0 0.0
    %975 = vmatpush1.msra.mxu0 %v970
    %976 = vmatprep.subr.mxu0 0.0
    %977 = vmatpush1.msra.mxu0 %v969
    %978 = vmatprep.subr.mxu0 0.0
    %979 = vmatpush1.msra.mxu0 %v968
    %980 = vmatprep.subr.mxu0 0.0
    %981 = vmatpush1.msra.mxu0 %v967
    %982 = vmatprep.subr.mxu0 0.0
    %983 = vmatpush1.msra.mxu0 %v966
    %984 = vmatprep.subr.mxu0 0.0
    %985 = vmatpush1.msra.mxu0 %v965
    %986 = vmatprep.subr.mxu0 0.0
    %987 = vmatpush1.msra.mxu0 %v964
    %988 = vmatprep.subr.mxu0 0.0
    %989 = vmatpush1.msra.mxu0 %v963
    %990 = vmatprep.subr.mxu0 0.0
    %991 = vmatpush1.msra.mxu0 %v962
    %992 = vmatprep.subr.mxu0 0.0
    %993 = vmatpush1.msra.mxu0 %v961
    %994 = vmatprep.subr.mxu0 0.0
    %995 = vmatpush1.msra.mxu0 %v960
    %996 = vmatprep.subr.mxu0 0.0
    %997 = vmatpush1.msra.mxu0 %v959
    %998 = vmatprep.subr.mxu0 0.0
    %999 = vmatpush1.msra.mxu0 %v958
    %1000 = vmatprep.subr.mxu0 0.0
    %1001 = vmatpush1.msra.mxu0 %v957
    %1002 = vmatprep.subr.mxu0 0.0
    %1003 = vmatpush1.msra.mxu0 %v956
    %1004 = vmatprep.subr.mxu0 0.0
    %1005 = vmatpush2.msra.mxu0 0.0
    %1006 = vmatprep.subr.mxu0 0.0
    %1007 = vmatpush2.msra.mxu0 0.0
    %1008 = vmatprep.subr.mxu0 0.0
    %1009 = vmatpush2.msra.mxu0 0.0
    %1010 = vmatprep.subr.mxu0 0.0
    %1011 = vmatpush2.msra.mxu0 0.0
    %1012 = vmatprep.subr.mxu0 0.0
    %1013 = vmatpush2.msra.mxu0 0.0
    %1014 = vmatprep.subr.mxu0 0.0
    %1015 = vmatpush2.msra.mxu0 0.0
    %1016 = vmatprep.subr.mxu0 0.0
    %1017 = vmatpush2.msra.mxu0 0.0
    %1018 = vmatprep.subr.mxu0 0.0
    %1019 = vmatpush2.msra.mxu0 0.0
    %1020 = vmatprep.subr.mxu0 0.0
    %1021 = vmatpush2.msra.mxu0 0.0
    %1022 = vmatprep.subr.mxu0 0.0
    %1023 = vmatpush2.msra.mxu0 0.0
    %1024 = vmatprep.subr.mxu0 0.0
    %1025 = vmatpush2.msra.mxu0 0.0
    %1026 = vmatprep.subr.mxu0 0.0
    %1027 = vmatpush2.msra.mxu0 0.0
    %1028 = vmatprep.subr.mxu0 0.0
    %1029 = vmatpush2.msra.mxu0 0.0
    %1030 = vmatprep.subr.mxu0 0.0
    %1031 = vmatpush2.msra.mxu0 0.0
    %1032 = vmatprep.subr.mxu0 0.0
    %1033 = vmatpush2.msra.mxu0 0.0
    %1034 = vmatprep.subr.mxu0 0.0
    %1035 = vmatpush2.msra.mxu0 0.0
    %1036 = vmatprep.mubr.f32.mxu0 0.0
    %1037 = vmatmul.mubr.f32.gmra.mxu0 1.0
    %v1038 = vpop.f32.mrf.mxu0
    %v1039 = vadd.f32 0.0, %v1038
    %v1040 = vpop.f32.mrf.mxu0
    %1041 = vdwg.mxu0
    %v1042 = vld [vmem:[%s6] sm:$0xff]
    %v1043 = vld [vmem:[%s6 + $0x8] sm:$0xff]
    %v1044 = vld [vmem:[%s6 + $0x10] sm:$0xff]
    %v1045 = vld [vmem:[%s6 + $0x18] sm:$0xff]
    %v1046 = vld [vmem:[%s6 + $0x20] sm:$0xff]
    %v1047 = vld [vmem:[%s6 + $0x28] sm:$0xff]
    %v1048 = vld [vmem:[%s6 + $0x30] sm:$0xff]
    %v1049 = vld [vmem:[%s6 + $0x38] sm:$0xff]
    %v1050 = vld [vmem:[%s6 + $0x40] sm:$0xff]
    %v1051 = vld [vmem:[%s6 + $0x48] sm:$0xff]
    %v1052 = vld [vmem:[%s6 + $0x50] sm:$0xff]
    %v1053 = vld [vmem:[%s6 + $0x58] sm:$0xff]
    %v1054 = vld [vmem:[%s6 + $0x60] sm:$0xff]
    %v1055 = vld [vmem:[%s6 + $0x68] sm:$0xff]
    %v1056 = vld [vmem:[%s6 + $0x70] sm:$0xff]
    %v1057 = vld [vmem:[%s6 + $0x78] sm:$0xff]
    %v1058 = vld [vmem:[%s7] sm:$0x1]
    %1059 = vmatprep.subr.mxu0 0.0
    %1060 = vmatpush1.msra.mxu0 %v1057
    %1061 = vmatprep.subr.mxu0 0.0
    %1062 = vmatpush1.msra.mxu0 %v1056
    %1063 = vmatprep.subr.mxu0 0.0
    %1064 = vmatpush1.msra.mxu0 %v1055
    %1065 = vmatprep.subr.mxu0 0.0
    %1066 = vmatpush1.msra.mxu0 %v1054
    %1067 = vmatprep.subr.mxu0 0.0
    %1068 = vmatpush1.msra.mxu0 %v1053
    %1069 = vmatprep.subr.mxu0 0.0
    %1070 = vmatpush1.msra.mxu0 %v1052
    %1071 = vmatprep.subr.mxu0 0.0
    %1072 = vmatpush1.msra.mxu0 %v1051
    %1073 = vmatprep.subr.mxu0 0.0
    %1074 = vmatpush1.msra.mxu0 %v1050
    %1075 = vmatprep.subr.mxu0 0.0
    %1076 = vmatpush1.msra.mxu0 %v1049
    %1077 = vmatprep.subr.mxu0 0.0
    %1078 = vmatpush1.msra.mxu0 %v1048
    %1079 = vmatprep.subr.mxu0 0.0
    %1080 = vmatpush1.msra.mxu0 %v1047
    %1081 = vmatprep.subr.mxu0 0.0
    %1082 = vmatpush1.msra.mxu0 %v1046
    %1083 = vmatprep.subr.mxu0 0.0
    %1084 = vmatpush1.msra.mxu0 %v1045
    %1085 = vmatprep.subr.mxu0 0.0
    %1086 = vmatpush1.msra.mxu0 %v1044
    %1087 = vmatprep.subr.mxu0 0.0
    %1088 = vmatpush1.msra.mxu0 %v1043
    %1089 = vmatprep.subr.mxu0 0.0
    %1090 = vmatpush1.msra.mxu0 %v1042
    %1091 = vmatprep.subr.mxu0 0.0
    %1092 = vmatpush2.msra.mxu0 0.0
    %1093 = vmatprep.subr.mxu0 0.0
    %1094 = vmatpush2.msra.mxu0 0.0
    %1095 = vmatprep.subr.mxu0 0.0
    %1096 = vmatpush2.msra.mxu0 0.0
    %1097 = vmatprep.subr.mxu0 0.0
    %1098 = vmatpush2.msra.mxu0 0.0
    %1099 = vmatprep.subr.mxu0 0.0
    %1100 = vmatpush2.msra.mxu0 0.0
    %1101 = vmatprep.subr.mxu0 0.0
    %1102 = vmatpush2.msra.mxu0 0.0
    %1103 = vmatprep.subr.mxu0 0.0
    %1104 = vmatpush2.msra.mxu0 0.0
    %1105 = vmatprep.subr.mxu0 0.0
    %1106 = vmatpush2.msra.mxu0 0.0
    %1107 = vmatprep.subr.mxu0 0.0
    %1108 = vmatpush2.msra.mxu0 0.0
    %1109 = vmatprep.subr.mxu0 0.0
    %1110 = vmatpush2.msra.mxu0 0.0
    %1111 = vmatprep.subr.mxu0 0.0
    %1112 = vmatpush2.msra.mxu0 0.0
    %1113 = vmatprep.subr.mxu0 0.0
    %1114 = vmatpush2.msra.mxu0 0.0
    %1115 = vmatprep.subr.mxu0 0.0
    %1116 = vmatpush2.msra.mxu0 0.0
    %1117 = vmatprep.subr.mxu0 0.0
    %1118 = vmatpush2.msra.mxu0 0.0
    %1119 = vmatprep.subr.mxu0 0.0
    %1120 = vmatpush2.msra.mxu0 0.0
    %1121 = vmatprep.subr.mxu0 0.0
    %1122 = vmatpush2.msra.mxu0 0.0
    %1123 = vmatprep.mubr.f32.mxu0 0.0
    %1124 = vmatmul.mubr.f32.gmra.mxu0 %v1039
    %v1125 = vpop.f32.mrf.mxu0
    %v1126 = vadd.f32 %v1058, %v1125
    %v1127 = vpop.f32.mrf.mxu0
    %1128 = vdwg.mxu0
    %vm1129 = vcmask 1040384
    %v1130 = vsel %vm1129, %v1126, -inf
    %1131 = vmax.xlane.f32.xlu0 %v1130
    %v1132 = vpop.xlane.xlu0 %1131
    %v1133 = vsub.f32 %v1126, %v1132
    %v1134 = vmul.f32 %v1133, 1.442695
    %v1135 = vpow.pop %v1134
    %v1136 = vsel %vm1129, %v1135, 0.0
    %1137 = vadd.xlane.f32.xlu0 %v1136
    %v1138 = vpop.xlane.xlu0 %1137
    %v1139 = vrcp.pop %v1138
    %v1140 = vmul.f32 %v1135, %v1139
    %1141 = vst [vmem:[#allocation2] sm:$0x1] %v1140
    %v1142 = vld [vmem:[%s3] sm:$0xff]
    %v1143 = vld [vmem:[%s3 + $0x8] sm:$0xff]
    %v1144 = vld [vmem:[%s3 + $0x10] sm:$0xff]
    %v1145 = vld [vmem:[%s3 + $0x18] sm:$0xff]
    %v1146 = vld [vmem:[%s3 + $0x20] sm:$0xff]
    %v1147 = vld [vmem:[%s3 + $0x28] sm:$0xff]
    %v1148 = vld [vmem:[%s3 + $0x30] sm:$0xff]
    %v1149 = vld [vmem:[%s3 + $0x38] sm:$0xff]
    %v1150 = vld [vmem:[%s3 + $0x40] sm:$0xff]
    %v1151 = vld [vmem:[%s3 + $0x48] sm:$0xff]
    %v1152 = vld [vmem:[%s3 + $0x50] sm:$0xff]
    %v1153 = vld [vmem:[%s3 + $0x58] sm:$0xff]
    %v1154 = vld [vmem:[%s3 + $0x60] sm:$0xff]
    %v1155 = vld [vmem:[%s3 + $0x68] sm:$0xff]
    %v1156 = vld [vmem:[%s3 + $0x70] sm:$0xff]
    %v1157 = vld [vmem:[%s3 + $0x78] sm:$0xff]
    %v1158 = vld [vmem:[%s3 + $0x80] sm:$0xff]
    %v1159 = vld [vmem:[%s3 + $0x88] sm:$0xff]
    %v1160 = vld [vmem:[%s3 + $0x90] sm:$0xff]
    %v1161 = vld [vmem:[%s3 + $0x98] sm:$0xff]
    %v1162 = vld [vmem:[%s3 + $0xa0] sm:$0xff]
    %v1163 = vld [vmem:[%s3 + $0xa8] sm:$0xff]
    %v1164 = vld [vmem:[%s3 + $0xb0] sm:$0xff]
    %v1165 = vld [vmem:[%s3 + $0xb8] sm:$0xff]
    %v1166 = vld [vmem:[%s3 + $0xc0] sm:$0xff]
    %v1167 = vld [vmem:[%s3 + $0xc8] sm:$0xff]
    %v1168 = vld [vmem:[%s3 + $0xd0] sm:$0xff]
    %v1169 = vld [vmem:[%s3 + $0xd8] sm:$0xff]
    %v1170 = vld [vmem:[%s3 + $0xe0] sm:$0xff]
    %v1171 = vld [vmem:[%s3 + $0xe8] sm:$0xff]
    %v1172 = vld [vmem:[%s3 + $0xf0] sm:$0xff]
    %v1173 = vld [vmem:[%s3 + $0xf8] sm:$0xff]
    %1174 = vmatprep.subr.mxu0 0.0
    %1175 = vmatpush1.msra.mxu0 %v1157
    %1176 = vmatprep.subr.mxu0 0.0
    %1177 = vmatpush1.msra.mxu0 %v1156
    %1178 = vmatprep.subr.mxu0 0.0
    %1179 = vmatpush1.msra.mxu0 %v1155
    %1180 = vmatprep.subr.mxu0 0.0
    %1181 = vmatpush1.msra.mxu0 %v1154
    %1182 = vmatprep.subr.mxu0 0.0
    %1183 = vmatpush1.msra.mxu0 %v1153
    %1184 = vmatprep.subr.mxu0 0.0
    %1185 = vmatpush1.msra.mxu0 %v1152
    %1186 = vmatprep.subr.mxu0 0.0
    %1187 = vmatpush1.msra.mxu0 %v1151
    %1188 = vmatprep.subr.mxu0 0.0
    %1189 = vmatpush1.msra.mxu0 %v1150
    %1190 = vmatprep.subr.mxu0 0.0
    %1191 = vmatpush1.msra.mxu0 %v1149
    %1192 = vmatprep.subr.mxu0 0.0
    %1193 = vmatpush1.msra.mxu0 %v1148
    %1194 = vmatprep.subr.mxu0 0.0
    %1195 = vmatpush1.msra.mxu0 %v1147
    %1196 = vmatprep.subr.mxu0 0.0
    %1197 = vmatpush1.msra.mxu0 %v1146
    %1198 = vmatprep.subr.mxu0 0.0
    %1199 = vmatpush1.msra.mxu0 %v1145
    %1200 = vmatprep.subr.mxu0 0.0
    %1201 = vmatpush1.msra.mxu0 %v1144
    %1202 = vmatprep.subr.mxu0 0.0
    %1203 = vmatpush1.msra.mxu0 %v1143
    %1204 = vmatprep.subr.mxu0 0.0
    %1205 = vmatpush1.msra.mxu0 %v1142
    %1206 = vmatprep.subr.mxu0 0.0
    %1207 = vmatpush2.msra.mxu0 %v1173
    %1208 = vmatprep.subr.mxu0 0.0
    %1209 = vmatpush2.msra.mxu0 %v1172
    %1210 = vmatprep.subr.mxu0 0.0
    %1211 = vmatpush2.msra.mxu0 %v1171
    %1212 = vmatprep.subr.mxu0 0.0
    %1213 = vmatpush2.msra.mxu0 %v1170
    %1214 = vmatprep.subr.mxu0 0.0
    %1215 = vmatpush2.msra.mxu0 %v1169
    %1216 = vmatprep.subr.mxu0 0.0
    %1217 = vmatpush2.msra.mxu0 %v1168
    %1218 = vmatprep.subr.mxu0 0.0
    %1219 = vmatpush2.msra.mxu0 %v1167
    %1220 = vmatprep.subr.mxu0 0.0
    %1221 = vmatpush2.msra.mxu0 %v1166
    %1222 = vmatprep.subr.mxu0 0.0
    %1223 = vmatpush2.msra.mxu0 %v1165
    %1224 = vmatprep.subr.mxu0 0.0
    %1225 = vmatpush2.msra.mxu0 %v1164
    %1226 = vmatprep.subr.mxu0 0.0
    %1227 = vmatpush2.msra.mxu0 %v1163
    %1228 = vmatprep.subr.mxu0 0.0
    %1229 = vmatpush2.msra.mxu0 %v1162
    %1230 = vmatprep.subr.mxu0 0.0
    %1231 = vmatpush2.msra.mxu0 %v1161
    %1232 = vmatprep.subr.mxu0 0.0
    %1233 = vmatpush2.msra.mxu0 %v1160
    %1234 = vmatprep.subr.mxu0 0.0
    %1235 = vmatpush2.msra.mxu0 %v1159
    %1236 = vmatprep.subr.mxu0 0.0
    %1237 = vmatpush2.msra.mxu0 %v1158
    %1238 = vmatprep.mubr.f32.mxu0 %v626
    %1239 = vmatmul.mubr.f32.gmra.mxu0 %v624
    %v1240 = vpop.f32.mrf.mxu0
    %v1241 = vadd.f32 0.0, %v1240
    %v1242 = vpop.f32.mrf.mxu0
    %1243 = vdwg.mxu0
    %1244 = vrot.lane.b32.xlu0 %v1241, 1
    %v1245 = vpop.permute.xlu0 %1244
    %v1246 = vmul.f32 %v737, %v1245
    %1247 = vrot.lane.b32.xlu0 %v1241, 127
    %v1248 = vpop.permute.xlu0 %1247
    %v1249 = vmul.f32 %v744, %v1248
    %v1250 = vld [vmem:[%s5] sm:$0xff]
    %v1251 = vld [vmem:[%s5 + $0x8] sm:$0xff]
    %v1252 = vld [vmem:[%s5 + $0x10] sm:$0xff]
    %v1253 = vld [vmem:[%s5 + $0x18] sm:$0xff]
    %v1254 = vld [vmem:[%s5 + $0x20] sm:$0xff]
    %v1255 = vld [vmem:[%s5 + $0x28] sm:$0xff]
    %v1256 = vld [vmem:[%s5 + $0x30] sm:$0xff]
    %v1257 = vld [vmem:[%s5 + $0x38] sm:$0xff]
    %v1258 = vld [vmem:[%s5 + $0x40] sm:$0xff]
    %v1259 = vld [vmem:[%s5 + $0x48] sm:$0xff]
    %v1260 = vld [vmem:[%s5 + $0x50] sm:$0xff]
    %v1261 = vld [vmem:[%s5 + $0x58] sm:$0xff]
    %v1262 = vld [vmem:[%s5 + $0x60] sm:$0xff]
    %v1263 = vld [vmem:[%s5 + $0x68] sm:$0xff]
    %v1264 = vld [vmem:[%s5 + $0x70] sm:$0xff]
    %v1265 = vld [vmem:[%s5 + $0x78] sm:$0xff]
    %v1267 = vsel %vm762, %v1250, 0
    %v1270 = vsel %vm762, %v1251, 0
    %v1273 = vsel %vm762, %v1252, 0
    %v1276 = vsel %vm762, %v1253, 0
    %v1279 = vsel %vm762, %v1254, 0
    %v1282 = vsel %vm762, %v1255, 0
    %v1285 = vsel %vm762, %v1256, 0
    %v1288 = vsel %vm762, %v1257, 0
    %v1291 = vsel %vm762, %v1258, 0
    %v1294 = vsel %vm762, %v1259, 0
    %v1297 = vsel %vm762, %v1260, 0
    %v1300 = vsel %vm762, %v1261, 0
    %v1303 = vsel %vm762, %v1262, 0
    %v1306 = vsel %vm762, %v1263, 0
    %v1309 = vsel %vm762, %v1264, 0
    %v1312 = vsel %vm762, %v1265, 0
    %1314 = vmatprep.subr.mxu0 0.0
    %1315 = vmatpush1.msra.mxu0 0.0
    %1316 = vmatprep.subr.mxu0 0.0
    %1317 = vmatpush1.msra.mxu0 0.0
    %1318 = vmatprep.subr.mxu0 0.0
    %1319 = vmatpush1.msra.mxu0 0.0
    %1320 = vmatprep.subr.mxu0 0.0
    %1321 = vmatpush1.msra.mxu0 0.0
    %1322 = vmatprep.subr.mxu0 0.0
    %1323 = vmatpush1.msra.mxu0 0.0
    %1324 = vmatprep.subr.mxu0 0.0
    %1325 = vmatpush1.msra.mxu0 0.0
    %1326 = vmatprep.subr.mxu0 0.0
    %1327 = vmatpush1.msra.mxu0 0.0
    %1328 = vmatprep.subr.mxu0 0.0
    %1329 = vmatpush1.msra.mxu0 0.0
    %1330 = vmatprep.subr.mxu0 0.0
    %1331 = vmatpush1.msra.mxu0 0.0
    %1332 = vmatprep.subr.mxu0 0.0
    %1333 = vmatpush1.msra.mxu0 0.0
    %1334 = vmatprep.subr.mxu0 0.0
    %1335 = vmatpush1.msra.mxu0 0.0
    %1336 = vmatprep.subr.mxu0 0.0
    %1337 = vmatpush1.msra.mxu0 0.0
    %1338 = vmatprep.subr.mxu0 0.0
    %1339 = vmatpush1.msra.mxu0 1.0
    %1340 = vmatprep.subr.mxu0 0.0
    %1341 = vmatpush1.msra.mxu0 %v1249
    %1342 = vmatprep.subr.mxu0 0.0
    %1343 = vmatpush1.msra.mxu0 %v1241
    %1344 = vmatprep.subr.mxu0 0.0
    %1345 = vmatpush1.msra.mxu0 %v1246
    %1346 = vmatprep.subr.mxu0 0.0
    %1347 = vmatpush2.msra.mxu0 0.0
    %1348 = vmatprep.subr.mxu0 0.0
    %1349 = vmatpush2.msra.mxu0 0.0
    %1350 = vmatprep.subr.mxu0 0.0
    %1351 = vmatpush2.msra.mxu0 0.0
    %1352 = vmatprep.subr.mxu0 0.0
    %1353 = vmatpush2.msra.mxu0 0.0
    %1354 = vmatprep.subr.mxu0 0.0
    %1355 = vmatpush2.msra.mxu0 0.0
    %1356 = vmatprep.subr.mxu0 0.0
    %1357 = vmatpush2.msra.mxu0 0.0
    %1358 = vmatprep.subr.mxu0 0.0
    %1359 = vmatpush2.msra.mxu0 0.0
    %1360 = vmatprep.subr.mxu0 0.0
    %1361 = vmatpush2.msra.mxu0 0.0
    %1362 = vmatprep.subr.mxu0 0.0
    %1363 = vmatpush2.msra.mxu0 0.0
    %1364 = vmatprep.subr.mxu0 0.0
    %1365 = vmatpush2.msra.mxu0 0.0
    %1366 = vmatprep.subr.mxu0 0.0
    %1367 = vmatpush2.msra.mxu0 0.0
    %1368 = vmatprep.subr.mxu0 0.0
    %1369 = vmatpush2.msra.mxu0 0.0
    %1370 = vmatprep.subr.mxu0 0.0
    %1371 = vmatpush2.msra.mxu0 0.0
    %1372 = vmatprep.subr.mxu0 0.0
    %1373 = vmatpush2.msra.mxu0 0.0
    %1374 = vmatprep.subr.mxu0 0.0
    %1375 = vmatpush2.msra.mxu0 0.0
    %1376 = vmatprep.subr.mxu0 0.0
    %1377 = vmatpush2.msra.mxu0 0.0
    %1378 = vmatprep.mubr.f32.mxu0 0.0
    %1379 = vmatmul.mubr.f32.gmra.mxu0 %v1267
    %v1380 = vpop.f32.mrf.mxu0
    %v1381 = vadd.f32 0.0, %v1380
    %v1382 = vpop.f32.mrf.mxu0
    %1383 = vmatprep.mubr.f32.mxu0 0.0
    %1384 = vmatmul.mubr.f32.gmra.mxu0 %v1270
    %v1385 = vpop.f32.mrf.mxu0
    %v1386 = vadd.f32 0.0, %v1385
    %v1387 = vpop.f32.mrf.mxu0
    %1388 = vmatprep.mubr.f32.mxu0 0.0
    %1389 = vmatmul.mubr.f32.gmra.mxu0 %v1273
    %v1390 = vpop.f32.mrf.mxu0
    %v1391 = vadd.f32 0.0, %v1390
    %v1392 = vpop.f32.mrf.mxu0
    %1393 = vmatprep.mubr.f32.mxu0 0.0
    %1394 = vmatmul.mubr.f32.gmra.mxu0 %v1276
    %v1395 = vpop.f32.mrf.mxu0
    %v1396 = vadd.f32 0.0, %v1395
    %v1397 = vpop.f32.mrf.mxu0
    %1398 = vmatprep.mubr.f32.mxu0 0.0
    %1399 = vmatmul.mubr.f32.gmra.mxu0 %v1279
    %v1400 = vpop.f32.mrf.mxu0
    %v1401 = vadd.f32 0.0, %v1400
    %v1402 = vpop.f32.mrf.mxu0
    %1403 = vmatprep.mubr.f32.mxu0 0.0
    %1404 = vmatmul.mubr.f32.gmra.mxu0 %v1282
    %v1405 = vpop.f32.mrf.mxu0
    %v1406 = vadd.f32 0.0, %v1405
    %v1407 = vpop.f32.mrf.mxu0
    %1408 = vmatprep.mubr.f32.mxu0 0.0
    %1409 = vmatmul.mubr.f32.gmra.mxu0 %v1285
    %v1410 = vpop.f32.mrf.mxu0
    %v1411 = vadd.f32 0.0, %v1410
    %v1412 = vpop.f32.mrf.mxu0
    %1413 = vmatprep.mubr.f32.mxu0 0.0
    %1414 = vmatmul.mubr.f32.gmra.mxu0 %v1288
    %v1415 = vpop.f32.mrf.mxu0
    %v1416 = vadd.f32 0.0, %v1415
    %v1417 = vpop.f32.mrf.mxu0
    %1418 = vmatprep.mubr.f32.mxu0 0.0
    %1419 = vmatmul.mubr.f32.gmra.mxu0 %v1291
    %v1420 = vpop.f32.mrf.mxu0
    %v1421 = vadd.f32 0.0, %v1420
    %v1422 = vpop.f32.mrf.mxu0
    %1423 = vmatprep.mubr.f32.mxu0 0.0
    %1424 = vmatmul.mubr.f32.gmra.mxu0 %v1294
    %v1425 = vpop.f32.mrf.mxu0
    %v1426 = vadd.f32 0.0, %v1425
    %v1427 = vpop.f32.mrf.mxu0
    %1428 = vmatprep.mubr.f32.mxu0 0.0
    %1429 = vmatmul.mubr.f32.gmra.mxu0 %v1297
    %v1430 = vpop.f32.mrf.mxu0
    %v1431 = vadd.f32 0.0, %v1430
    %v1432 = vpop.f32.mrf.mxu0
    %1433 = vmatprep.mubr.f32.mxu0 0.0
    %1434 = vmatmul.mubr.f32.gmra.mxu0 %v1300
    %v1435 = vpop.f32.mrf.mxu0
    %v1436 = vadd.f32 0.0, %v1435
    %v1437 = vpop.f32.mrf.mxu0
    %1438 = vmatprep.mubr.f32.mxu0 0.0
    %1439 = vmatmul.mubr.f32.gmra.mxu0 %v1303
    %v1440 = vpop.f32.mrf.mxu0
    %v1441 = vadd.f32 0.0, %v1440
    %v1442 = vpop.f32.mrf.mxu0
    %1443 = vmatprep.mubr.f32.mxu0 0.0
    %1444 = vmatmul.mubr.f32.gmra.mxu0 %v1306
    %v1445 = vpop.f32.mrf.mxu0
    %v1446 = vadd.f32 0.0, %v1445
    %v1447 = vpop.f32.mrf.mxu0
    %1448 = vmatprep.mubr.f32.mxu0 0.0
    %1449 = vmatmul.mubr.f32.gmra.mxu0 %v1309
    %v1450 = vpop.f32.mrf.mxu0
    %v1451 = vadd.f32 0.0, %v1450
    %v1452 = vpop.f32.mrf.mxu0
    %1453 = vmatprep.mubr.f32.mxu0 0.0
    %1454 = vmatmul.mubr.f32.gmra.mxu0 %v1312
    %v1455 = vpop.f32.mrf.mxu0
    %v1456 = vadd.f32 0.0, %v1455
    %v1457 = vpop.f32.mrf.mxu0
    %1458 = vdwg.mxu0
    %v1459 = vmax.f32 %v1381, 0.0
    %v1460 = vmax.f32 %v1386, 0.0
    %v1461 = vmax.f32 %v1391, 0.0
    %v1462 = vmax.f32 %v1396, 0.0
    %v1463 = vmax.f32 %v1401, 0.0
    %v1464 = vmax.f32 %v1406, 0.0
    %v1465 = vmax.f32 %v1411, 0.0
    %v1466 = vmax.f32 %v1416, 0.0
    %v1467 = vmax.f32 %v1421, 0.0
    %v1468 = vmax.f32 %v1426, 0.0
    %v1469 = vmax.f32 %v1431, 0.0
    %v1470 = vmax.f32 %v1436, 0.0
    %v1471 = vmax.f32 %v1441, 0.0
    %v1472 = vmax.f32 %v1446, 0.0
    %v1473 = vmax.f32 %v1451, 0.0
    %v1474 = vmax.f32 %v1456, 0.0
    %1475 = vmatprep.subr.mxu0 0.0
    %1476 = vmatpush1.msra.mxu0 %v1474
    %1477 = vmatprep.subr.mxu0 0.0
    %1478 = vmatpush1.msra.mxu0 %v1473
    %1479 = vmatprep.subr.mxu0 0.0
    %1480 = vmatpush1.msra.mxu0 %v1472
    %1481 = vmatprep.subr.mxu0 0.0
    %1482 = vmatpush1.msra.mxu0 %v1471
    %1483 = vmatprep.subr.mxu0 0.0
    %1484 = vmatpush1.msra.mxu0 %v1470
    %1485 = vmatprep.subr.mxu0 0.0
    %1486 = vmatpush1.msra.mxu0 %v1469
    %1487 = vmatprep.subr.mxu0 0.0
    %1488 = vmatpush1.msra.mxu0 %v1468
    %1489 = vmatprep.subr.mxu0 0.0
    %1490 = vmatpush1.msra.mxu0 %v1467
    %1491 = vmatprep.subr.mxu0 0.0
    %1492 = vmatpush1.msra.mxu0 %v1466
    %1493 = vmatprep.subr.mxu0 0.0
    %1494 = vmatpush1.msra.mxu0 %v1465
    %1495 = vmatprep.subr.mxu0 0.0
    %1496 = vmatpush1.msra.mxu0 %v1464
    %1497 = vmatprep.subr.mxu0 0.0
    %1498 = vmatpush1.msra.mxu0 %v1463
    %1499 = vmatprep.subr.mxu0 0.0
    %1500 = vmatpush1.msra.mxu0 %v1462
    %1501 = vmatprep.subr.mxu0 0.0
    %1502 = vmatpush1.msra.mxu0 %v1461
    %1503 = vmatprep.subr.mxu0 0.0
    %1504 = vmatpush1.msra.mxu0 %v1460
    %1505 = vmatprep.subr.mxu0 0.0
    %1506 = vmatpush1.msra.mxu0 %v1459
    %1507 = vmatprep.subr.mxu0 0.0
    %1508 = vmatpush2.msra.mxu0 0.0
    %1509 = vmatprep.subr.mxu0 0.0
    %1510 = vmatpush2.msra.mxu0 0.0
    %1511 = vmatprep.subr.mxu0 0.0
    %1512 = vmatpush2.msra.mxu0 0.0
    %1513 = vmatprep.subr.mxu0 0.0
    %1514 = vmatpush2.msra.mxu0 0.0
    %1515 = vmatprep.subr.mxu0 0.0
    %1516 = vmatpush2.msra.mxu0 0.0
    %1517 = vmatprep.subr.mxu0 0.0
    %1518 = vmatpush2.msra.mxu0 0.0
    %1519 = vmatprep.subr.mxu0 0.0
    %1520 = vmatpush2.msra.mxu0 0.0
    %1521 = vmatprep.subr.mxu0 0.0
    %1522 = vmatpush2.msra.mxu0 0.0
    %1523 = vmatprep.subr.mxu0 0.0
    %1524 = vmatpush2.msra.mxu0 0.0
    %1525 = vmatprep.subr.mxu0 0.0
    %1526 = vmatpush2.msra.mxu0 0.0
    %1527 = vmatprep.subr.mxu0 0.0
    %1528 = vmatpush2.msra.mxu0 0.0
    %1529 = vmatprep.subr.mxu0 0.0
    %1530 = vmatpush2.msra.mxu0 0.0
    %1531 = vmatprep.subr.mxu0 0.0
    %1532 = vmatpush2.msra.mxu0 0.0
    %1533 = vmatprep.subr.mxu0 0.0
    %1534 = vmatpush2.msra.mxu0 0.0
    %1535 = vmatprep.subr.mxu0 0.0
    %1536 = vmatpush2.msra.mxu0 0.0
    %1537 = vmatprep.subr.mxu0 0.0
    %1538 = vmatpush2.msra.mxu0 0.0
    %1539 = vmatprep.mubr.f32.mxu0 0.0
    %1540 = vmatmul.mubr.f32.gmra.mxu0 1.0
    %v1541 = vpop.f32.mrf.mxu0
    %v1542 = vadd.f32 0.0, %v1541
    %v1543 = vpop.f32.mrf.mxu0
    %1544 = vdwg.mxu0
    %v1545 = vld [vmem:[%s6] sm:$0xff]
    %v1546 = vld [vmem:[%s6 + $0x8] sm:$0xff]
    %v1547 = vld [vmem:[%s6 + $0x10] sm:$0xff]
    %v1548 = vld [vmem:[%s6 + $0x18] sm:$0xff]
    %v1549 = vld [vmem:[%s6 + $0x20] sm:$0xff]
    %v1550 = vld [vmem:[%s6 + $0x28] sm:$0xff]
    %v1551 = vld [vmem:[%s6 + $0x30] sm:$0xff]
    %v1552 = vld [vmem:[%s6 + $0x38] sm:$0xff]
    %v1553 = vld [vmem:[%s6 + $0x40] sm:$0xff]
    %v1554 = vld [vmem:[%s6 + $0x48] sm:$0xff]
    %v1555 = vld [vmem:[%s6 + $0x50] sm:$0xff]
    %v1556 = vld [vmem:[%s6 + $0x58] sm:$0xff]
    %v1557 = vld [vmem:[%s6 + $0x60] sm:$0xff]
    %v1558 = vld [vmem:[%s6 + $0x68] sm:$0xff]
    %v1559 = vld [vmem:[%s6 + $0x70] sm:$0xff]
    %v1560 = vld [vmem:[%s6 + $0x78] sm:$0xff]
    %v1561 = vld [vmem:[%s7] sm:$0x1]
    %1562 = vmatprep.subr.mxu0 0.0
    %1563 = vmatpush1.msra.mxu0 %v1560
    %1564 = vmatprep.subr.mxu0 0.0
    %1565 = vmatpush1.msra.mxu0 %v1559
    %1566 = vmatprep.subr.mxu0 0.0
    %1567 = vmatpush1.msra.mxu0 %v1558
    %1568 = vmatprep.subr.mxu0 0.0
    %1569 = vmatpush1.msra.mxu0 %v1557
    %1570 = vmatprep.subr.mxu0 0.0
    %1571 = vmatpush1.msra.mxu0 %v1556
    %1572 = vmatprep.subr.mxu0 0.0
    %1573 = vmatpush1.msra.mxu0 %v1555
    %1574 = vmatprep.subr.mxu0 0.0
    %1575 = vmatpush1.msra.mxu0 %v1554
    %1576 = vmatprep.subr.mxu0 0.0
    %1577 = vmatpush1.msra.mxu0 %v1553
    %1578 = vmatprep.subr.mxu0 0.0
    %1579 = vmatpush1.msra.mxu0 %v1552
    %1580 = vmatprep.subr.mxu0 0.0
    %1581 = vmatpush1.msra.mxu0 %v1551
    %1582 = vmatprep.subr.mxu0 0.0
    %1583 = vmatpush1.msra.mxu0 %v1550
    %1584 = vmatprep.subr.mxu0 0.0
    %1585 = vmatpush1.msra.mxu0 %v1549
    %1586 = vmatprep.subr.mxu0 0.0
    %1587 = vmatpush1.msra.mxu0 %v1548
    %1588 = vmatprep.subr.mxu0 0.0
    %1589 = vmatpush1.msra.mxu0 %v1547
    %1590 = vmatprep.subr.mxu0 0.0
    %1591 = vmatpush1.msra.mxu0 %v1546
    %1592 = vmatprep.subr.mxu0 0.0
    %1593 = vmatpush1.msra.mxu0 %v1545
    %1594 = vmatprep.subr.mxu0 0.0
    %1595 = vmatpush2.msra.mxu0 0.0
    %1596 = vmatprep.subr.mxu0 0.0
    %1597 = vmatpush2.msra.mxu0 0.0
    %1598 = vmatprep.subr.mxu0 0.0
    %1599 = vmatpush2.msra.mxu0 0.0
    %1600 = vmatprep.subr.mxu0 0.0
    %1601 = vmatpush2.msra.mxu0 0.0
    %1602 = vmatprep.subr.mxu0 0.0
    %1603 = vmatpush2.msra.mxu0 0.0
    %1604 = vmatprep.subr.mxu0 0.0
    %1605 = vmatpush2.msra.mxu0 0.0
    %1606 = vmatprep.subr.mxu0 0.0
    %1607 = vmatpush2.msra.mxu0 0.0
    %1608 = vmatprep.subr.mxu0 0.0
    %1609 = vmatpush2.msra.mxu0 0.0
    %1610 = vmatprep.subr.mxu0 0.0
    %1611 = vmatpush2.msra.mxu0 0.0
    %1612 = vmatprep.subr.mxu0 0.0
    %1613 = vmatpush2.msra.mxu0 0.0
    %1614 = vmatprep.subr.mxu0 0.0
    %1615 = vmatpush2.msra.mxu0 0.0
    %1616 = vmatprep.subr.mxu0 0.0
    %1617 = vmatpush2.msra.mxu0 0.0
    %1618 = vmatprep.subr.mxu0 0.0
    %1619 = vmatpush2.msra.mxu0 0.0
    %1620 = vmatprep.subr.mxu0 0.0
    %1621 = vmatpush2.msra.mxu0 0.0
    %1622 = vmatprep.subr.mxu0 0.0
    %1623 = vmatpush2.msra.mxu0 0.0
    %1624 = vmatprep.subr.mxu0 0.0
    %1625 = vmatpush2.msra.mxu0 0.0
    %1626 = vmatprep.mubr.f32.mxu0 0.0
    %1627 = vmatmul.mubr.f32.gmra.mxu0 %v1542
    %v1628 = vpop.f32.mrf.mxu0
    %v1629 = vadd.f32 %v1561, %v1628
    %v1630 = vpop.f32.mrf.mxu0
    %1631 = vdwg.mxu0
    %v1632 = vsel %vm1129, %v1629, -inf
    %1633 = vmax.xlane.f32.xlu0 %v1632
    %v1634 = vpop.xlane.xlu0 %1633
    %v1635 = vsub.f32 %v1629, %v1634
    %v1636 = vmul.f32 %v1635, 1.442695
    %v1637 = vpow.pop %v1636
    %v1638 = vsel %vm1129, %v1637, 0.0
    %1639 = vadd.xlane.f32.xlu0 %v1638
    %v1640 = vpop.xlane.xlu0 %1639
    %v1641 = vrcp.pop %v1640
    %v1642 = vmul.f32 %v1637, %v1641
    %1643 = vst [vmem:[#allocation2 + $0x1] sm:$0x1] %v1642
    // Predicated region
    $region34: #{cwru_forward.1} parent=1 // pred_check
      _
    $region35: #{cwru_forward.1} parent=1 // pred_check_branch
      %1645 = sbr.rel (0) target = $region37
    $region36: #{cwru_forward.1} parent=1 // pred_region
      %s1647 = ssub.s32 32, 32
      %1648 = vsyncadd [#allocation3], %s1647
      %s1650 = sshll.u32 [#allocation2], 4
      %s1651 = int_to_ptr.vmem [resolvable:$true] %s1650
      %1653 = dma.vmem_to_hbm [thread:$0]  %s1651, 32, %s8, [#allocation3]
    $region37: #{cwru_forward.1} parent=1 // pred_fallthru
      _
    // Predicated region
    $region38: #{cwru_forward.1} parent=1 // pred_check
      _
    $region39: #{cwru_forward.1} parent=1 // pred_check_branch
      %1655 = sbr.rel (0) target = $region41
    $region40: #{cwru_forward.1} parent=1 // pred_region
      %1656 = dma.done [#allocation3], 32
    $region41: #{cwru_forward.1} parent=1 // pred_fallthru
      _
    %1657 = vsyncpa [#allocation3], 1

</llo_original>
